<compile_context>
chip_gen: v7x
topology: tpu7x:2x2x1
jax: 0.10.0
libtpu: 0.0.40
codegen_flags: <defaults>
</compile_context>

<pallas_src>
import functools

import jax
import jax.numpy as jnp
from jax.experimental import pallas as pl
from jax.experimental.pallas import tpu as pltpu

NUM_CLASSES = 4        # cfg.MODEL.NUM_CLASSES
EMB_SIZE = 32          # cfg.MODEL.EMB_SIZE
PATCH_SIZE = 4         # cfg.MODEL.PATCH_SIZE
DIST2SIM_SLOPE = 0.5   # dist2sim_(dists, slope=0.5)


def _round_up(v, m):
    return (v + m - 1) // m * m


def _grood_kernel(pf_ref, m_ref, sel_ref, np_ref, out_ref):
    # pf_ref:  (Dp, TN)  bf16  patch features + ones row (bias), lane-dense cols
    # m_ref:   (R,  Dp)  f32   fused head:
    #                          rows 0:K*E     = [ L_c^T @ W_emb^T | -L_c^T mu_c ]
    #                          rows K*E:K*E+K = [ W_cls^T @ W_emb^T |     0     ]
    # sel_ref: (K, K*E)  f32   0/1 per-class group-sum selector
    # np_ref:  (K, 3)    f32   per-class [w_logit, w_sim, bias]
    # out_ref: (3K, TN)  f32   rows 0:K logits, K:2K nm_dist, 2K:3K score
    k, ke = sel_ref.shape

    # Upcast the streamed bf16 tile to f32 before the dot: the interpret/CPU
    # dot path does not support BF16xBF16=F32.  On a pure Mosaic/TPU lowering
    # you would keep bf16 operands for MXU-native passes.
    pf = pf_ref[...].astype(jnp.float32)                          # (Dp, TN)

    # One fused matmul: Mahalanobis residuals (bias folded in) + logits.
    yfull = jnp.dot(m_ref[...], pf,
                    preferred_element_type=jnp.float32)           # (R, TN)
    z = yfull[0:ke, :]                                            # L^T e - L^T mu
    logits = yfull[ke:ke + k, :]                                  # (K, TN)

    # Per-class Mahalanobis distance via a tiny selector matmul (stays on MXU).
    d2 = jnp.dot(sel_ref[...], z * z,
                 preferred_element_type=jnp.float32)              # (K, TN)
    nm_dist = jnp.sqrt(jnp.maximum(d2, 0.0))

    # dist2sim
    sim = 1.0 / (1.0 + DIST2SIM_SLOPE * nm_dist)

    # eval_neyman_pearson_task: per-class 2D decision function on (logit, sim)
    # TODO(synk): the true N-P model is a binned 2D likelihood-ratio model
    # fitted from training data; instantiated here as a per-class 2D logistic.
    npp = np_ref[...]                                             # (K, 3)
    score = jax.nn.sigmoid(npp[:, 0:1] * logits
                           + npp[:, 1:2] * sim
                           + npp[:, 2:3])                         # (K, TN)

    # Single unmasked (3K, TN) store.
    out_ref[...] = jnp.concatenate([logits, nm_dist, score], axis=0)


def init_params(key, in_channels):
    din = in_channels * PATCH_SIZE * PATCH_SIZE
    k1, k2, k3, k4 = jax.random.split(key, 4)
    w_emb = jax.random.normal(k1, (din, EMB_SIZE), jnp.float32) * 0.1
    w_cls = jax.random.normal(k2, (EMB_SIZE, NUM_CLASSES), jnp.float32) * 0.1
    mu = jax.random.normal(k3, (NUM_CLASSES, EMB_SIZE), jnp.float32)
    a = jax.random.normal(k4, (NUM_CLASSES, EMB_SIZE, EMB_SIZE), jnp.float32) * 0.05
    # SPD precisions with an identity jitter so the Cholesky is well conditioned.
    prec = (jnp.einsum("kij,klj->kil", a, a)
            + jnp.eye(EMB_SIZE, dtype=jnp.float32)[None])
    np_params = jnp.stack([
        jnp.ones((NUM_CLASSES,), jnp.float32),    # weight on logit_c
        jnp.ones((NUM_CLASSES,), jnp.float32),    # weight on sim_c
        jnp.zeros((NUM_CLASSES,), jnp.float32),   # bias
    ])
    return {"w_emb": w_emb, "w_cls": w_cls, "mu": mu, "prec": prec, "np": np_params}


@functools.partial(jax.jit, static_argnames=("tn",))
def grood_forward(x, params, tn=2048):
    b, c, h, w = x.shape
    p = PATCH_SIZE
    hp, wp = h // p, w // p
    k, e = NUM_CLASSES, EMB_SIZE
    din = c * p * p
    ke = k * e
    n = b * hp * wp

    # ---- patchify into feature-major (Din, N) layout -------------------------
    # column order = (b, hp, wp), feature order = (c, ph, pw) — matches the
    # reference's 'b hp wp c -> (b hp wp) c' rearranges.
    # TODO(synk): for real image sizes this transpose is an extra HBM round
    # trip; present x patch-major upstream (or DMA directly from NCHW with a
    # 2-D grid) to remove it.
    pf_t = x.reshape(b, c, hp, p, wp, p).transpose(1, 3, 5, 0, 2, 4)
    pf_t = pf_t.reshape(din, n).astype(jnp.float32)

    # Append a ones row so the Mahalanobis bias falls out of the fused matmul,
    # pad the feature axis up to a sublane multiple, and store bf16 (this is
    # the only streamed operand — halves HBM read bytes).
    dp = _round_up(din + 1, 8)
    pf_aug = jnp.concatenate(
        [pf_t,
         jnp.ones((1, n), jnp.float32),
         jnp.zeros((dp - din - 1, n), jnp.float32)], axis=0)
    pf_aug = pf_aug.astype(jnp.bfloat16)

    # ---- lane-tile selection --------------------------------------------------
    assert tn % 128 == 0, "row tile must be a multiple of 128 (lane width)"
    n128 = _round_up(n, 128)
    tn_eff = min(tn, n128)
    if tn_eff >= n128 and n128 >= 256:
        # keep >= 2 grid steps so the 'parallel' axis can shard across both
        # TensorCores on v7x (v5e/v6e have a single TC, no effect there)
        tn_eff = _round_up(n128 // 2, 128)
    n_pad = _round_up(n, tn_eff)
    if n_pad != n:
        pf_aug = jnp.pad(pf_aug, ((0, 0), (0, n_pad - n)))

    # ---- fold the whole linear head into one resident matrix -----------------
    # (tiny precompute; constant-folded / negligible per call)
    w_emb_t = params["w_emb"].T                                   # (E, Din)
    w_cls_t = params["w_cls"].T                                   # (K, E)
    chol = jnp.linalg.cholesky(params["prec"])                    # (K, E, E) = L_c
    l_all_t = jnp.transpose(chol, (0, 2, 1)).reshape(ke, e)       # stacked L_c^T
    b_all = jnp.einsum("ki,kij->kj", params["mu"], chol).reshape(ke, 1)  # L_c^T mu_c

    m_maha = jnp.concatenate([l_all_t @ w_emb_t, -b_all], axis=1)           # (K*E, Din+1)
    m_logit = jnp.concatenate([w_cls_t @ w_emb_t,
                               jnp.zeros((k, 1), jnp.float32)], axis=1)     # (K, Din+1)
    r = ke + k
    r_pad = _round_up(r, 8)
    m_full = jnp.zeros((r_pad, dp), jnp.float32)
    m_full = m_full.at[:r, :din + 1].set(
        jnp.concatenate([m_maha, m_logit], axis=0))

    # 0/1 per-class group-sum selector, precomputed (resident constant).
    sel = (jnp.arange(k)[:, None] == (jnp.arange(ke)[None, :] // e)
           ).astype(jnp.float32)                                  # (K, K*E)
    np_t = params["np"].T.astype(jnp.float32)                     # (K, 3)

    const2 = lambda d0, d1: pl.BlockSpec((d0, d1), lambda i: (0, 0))

    out = pl.pallas_call(
        _grood_kernel,
        out_shape=jax.ShapeDtypeStruct((3 * k, n_pad), jnp.float32),
        grid_spec=pltpu.PrefetchScalarGridSpec(
            num_scalar_prefetch=0,
            grid=(n_pad // tn_eff,),
            in_specs=[
                pl.BlockSpec((dp, tn_eff), lambda i: (0, i)),     # streamed patches
                const2(r_pad, dp),                                # fused head M
                const2(k, ke),                                    # group-sum selector
                const2(k, 3),                                     # N-P params
            ],
            out_specs=pl.BlockSpec((3 * k, tn_eff), lambda i: (0, i)),
        ),
        compiler_params=pltpu.CompilerParams(
            dimension_semantics=("parallel",)),
    )(pf_aug, m_full, sel, np_t)

    out = out[:, :n]                                              # drop lane padding
    logits = out[0:k].T.reshape(b, hp, wp, k)
    nm_dist = out[k:2 * k].T.reshape(b, hp, wp, k)
    score = out[2 * k:3 * k].T.reshape(b, hp, wp, k)

    # argmax / gather over K=4 is trivial — do it in XLA, not the kernel.
    pred_y_i = jnp.argmax(logits, axis=-1)                        # (B, hp, wp)
    pred_score = jnp.take_along_axis(score, pred_y_i[..., None], axis=-1)[..., 0]

    return {
        "pred_y": pred_y_i.astype(jnp.float32),   # forward casts pred_y.float()
        "pred_score": pred_score,
        "pred_score_all": score,
        "nm_dist": nm_dist,
        "logits": logits,
    }


def _reference_forward(x, params):
    """Pure-JAX f32 reference with the two-stage (unfused) formulation."""
    b, c, h, w = x.shape
    p = PATCH_SIZE
    hp, wp = h // p, w // p
    k = NUM_CLASSES
    pf = x.reshape(b, c, hp, p, wp, p).transpose(0, 2, 4, 1, 3, 5)
    pf = pf.reshape(b * hp * wp, c * p * p)
    emb = pf @ params["w_emb"]                                    # (N, E)
    logits = emb @ params["w_cls"]                                # (N, K)
    diff = emb[:, None, :] - params["mu"][None]                   # (N, K, E)
    d2 = jnp.einsum("nki,kij,nkj->nk", diff, params["prec"], diff)
    nm = jnp.sqrt(jnp.maximum(d2, 0.0))
    sim = 1.0 / (1.0 + DIST2SIM_SLOPE * nm)
    npp = params["np"]
    score = jax.nn.sigmoid(npp[0][None] * logits + npp[1][None] * sim
                           + npp[2][None])
    rs = lambda a: a.reshape(b, hp, wp, k)
    return rs(logits), rs(nm), rs(score)


if __name__ == "__main__":
    key = jax.random.PRNGKey(0)
    kx, kp = jax.random.split(key)
    B, C, H, W = 2, 4, 16, 16
    x = jax.random.normal(kx, (B, C, H, W), jnp.float32)   # NCHW like PyTorch
    params = init_params(kp, C)

    out = grood_forward(x, params, tn=2048)
    jax.block_until_ready(out)

    hp = wp = H // PATCH_SIZE
    assert out["pred_y"].shape == (B, hp, wp)
    assert out["pred_score"].shape == (B, hp, wp)
    assert out["pred_score_all"].shape == (B, hp, wp, NUM_CLASSES)
    assert out["nm_dist"].shape == (B, hp, wp, NUM_CLASSES)
    assert out["logits"].shape == (B, hp, wp, NUM_CLASSES)

    # correctness vs. the f32 reference (tolerance covers the bf16 streamed
    # input and the reassociated/folded matmuls)
    ref_logits, ref_nm, ref_score = _reference_forward(x, params)
    assert bool(jnp.allclose(out["logits"], ref_logits, rtol=5e-2, atol=5e-2))
    assert bool(jnp.allclose(out["nm_dist"], ref_nm, rtol=5e-2, atol=5e-2))
    assert bool(jnp.allclose(out["pred_score_all"], ref_score, rtol=5e-2, atol=5e-2))
    assert bool(jnp.all(jnp.isfinite(out["pred_score"])))

    print("KERNEL_OK")
</pallas_src>

<mosaic_0001>
module attributes {stable_mosaic.version = 11 : i64} {
  func.func @_grood_kernel(%arg0: i32, %arg1: memref<72x128xbf16, #tpu.memory_space<vmem>>, %arg2: memref<136x72xf32, #tpu.memory_space<vmem>>, %arg3: memref<4x128xf32, #tpu.memory_space<vmem>>, %arg4: memref<4x3xf32, #tpu.memory_space<vmem>>, %arg5: memref<12x128xf32, #tpu.memory_space<vmem>>) attributes {dimension_semantics = [#tpu.dimension_semantics<parallel>], iteration_bounds = array<i64: 1>, scalar_prefetch = 0 : i64, scratch_operands = 0 : i64, tpu.core_type = #tpu.core_type<tc>, window_params = [{transform_indices = @transform_0, window_bounds = array<i64: 72, 128>}, {pipeline_mode = #tpu.pipeline_mode<synchronous>, transform_indices = @transform_1, window_bounds = array<i64: 136, 72>}, {pipeline_mode = #tpu.pipeline_mode<synchronous>, transform_indices = @transform_2, window_bounds = array<i64: 4, 128>}, {pipeline_mode = #tpu.pipeline_mode<synchronous>, transform_indices = @transform_3, window_bounds = array<i64: 4, 3>}, {transform_indices = @transform_4, window_bounds = array<i64: 12, 128>}]} {
    %c0 = arith.constant 0 : index
    %c0_0 = arith.constant 0 : index
    %0 = vector.load %arg1[%c0, %c0_0] : memref<72x128xbf16, #tpu.memory_space<vmem>>, vector<72x128xbf16>
    %1 = arith.extf %0 : vector<72x128xbf16> to vector<72x128xf32>
    %c0_1 = arith.constant 0 : index
    %c0_2 = arith.constant 0 : index
    %2 = vector.load %arg2[%c0_1, %c0_2] : memref<136x72xf32, #tpu.memory_space<vmem>>, vector<136x72xf32>
    %cst = arith.constant dense<0.000000e+00> : vector<136x128xf32>
    %3 = tpu.matmul %2, %1, %cst {dimension_numbers = #tpu.dot_dimension_numbers<[1], [0], [0], [1], [0, 0, 1, 1], [], []>} : vector<136x72xf32>, vector<72x128xf32>, vector<136x128xf32> -> vector<136x128xf32>
    %4 = vector.extract_strided_slice %3 {offsets = [0, 0], sizes = [128, 128], strides = [1, 1]} : vector<136x128xf32> to vector<128x128xf32>
    %5 = vector.extract_strided_slice %3 {offsets = [128, 0], sizes = [4, 128], strides = [1, 1]} : vector<136x128xf32> to vector<4x128xf32>
    %c0_3 = arith.constant 0 : index
    %c0_4 = arith.constant 0 : index
    %6 = vector.load %arg3[%c0_3, %c0_4] : memref<4x128xf32, #tpu.memory_space<vmem>>, vector<4x128xf32>
    %7 = arith.mulf %4, %4 : vector<128x128xf32>
    %cst_5 = arith.constant dense<0.000000e+00> : vector<4x128xf32>
    %8 = tpu.matmul %6, %7, %cst_5 {dimension_numbers = #tpu.dot_dimension_numbers<[1], [0], [0], [1], [0, 0, 1, 1], [], []>} : vector<4x128xf32>, vector<128x128xf32>, vector<4x128xf32> -> vector<4x128xf32>
    %cst_6 = arith.constant 0.000000e+00 : f32
    %9 = vector.broadcast %cst_6 : f32 to vector<4x128xf32>
    %10 = arith.maximumf %8, %9 : vector<4x128xf32>
    %11 = math.sqrt %10 : vector<4x128xf32>
    %cst_7 = arith.constant 5.000000e-01 : f32
    %12 = vector.broadcast %cst_7 : f32 to vector<4x128xf32>
    %13 = arith.mulf %12, %11 : vector<4x128xf32>
    %cst_8 = arith.constant 1.000000e+00 : f32
    %14 = vector.broadcast %cst_8 : f32 to vector<4x128xf32>
    %15 = arith.addf %14, %13 : vector<4x128xf32>
    %cst_9 = arith.constant 1.000000e+00 : f32
    %16 = vector.broadcast %cst_9 : f32 to vector<4x128xf32>
    %17 = arith.divf %16, %15 : vector<4x128xf32>
    %c0_10 = arith.constant 0 : index
    %c0_11 = arith.constant 0 : index
    %18 = vector.load %arg4[%c0_10, %c0_11] : memref<4x3xf32, #tpu.memory_space<vmem>>, vector<4x3xf32>
    %19 = vector.extract_strided_slice %18 {offsets = [0, 0], sizes = [4, 1], strides = [1, 1]} : vector<4x3xf32> to vector<4x1xf32>
    %20 = vector.broadcast %19 : vector<4x1xf32> to vector<4x128xf32>
    %21 = arith.mulf %20, %5 : vector<4x128xf32>
    %22 = vector.extract_strided_slice %18 {offsets = [0, 1], sizes = [4, 1], strides = [1, 1]} : vector<4x3xf32> to vector<4x1xf32>
    %23 = vector.broadcast %22 : vector<4x1xf32> to vector<4x128xf32>
    %24 = arith.mulf %23, %17 : vector<4x128xf32>
    %25 = arith.addf %21, %24 : vector<4x128xf32>
    %26 = vector.extract_strided_slice %18 {offsets = [0, 2], sizes = [4, 1], strides = [1, 1]} : vector<4x3xf32> to vector<4x1xf32>
    %27 = vector.broadcast %26 : vector<4x1xf32> to vector<4x128xf32>
    %28 = arith.addf %25, %27 : vector<4x128xf32>
    %29 = arith.negf %28 : vector<4x128xf32>
    %30 = math.exp %29 : vector<4x128xf32>
    %cst_12 = arith.constant 1.000000e+00 : f32
    %31 = vector.broadcast %cst_12 : f32 to vector<4x128xf32>
    %32 = arith.addf %31, %30 : vector<4x128xf32>
    %33 = arith.divf %31, %32 : vector<4x128xf32>
    %34 = tpu.concatenate %5, %11, %33 in 0 : vector<4x128xf32>, vector<4x128xf32>, vector<4x128xf32> -> vector<12x128xf32>
    %c0_13 = arith.constant 0 : index
    %c0_14 = arith.constant 0 : index
    %35 = vector.load %arg5[%c0_13, %c0_14] : memref<12x128xf32, #tpu.memory_space<vmem>>, vector<12x128xf32>
    tpu.vector_store %arg5[%c0_13, %c0_14], %34 {strides = array<i32>} : memref<12x128xf32, #tpu.memory_space<vmem>>, vector<12x128xf32>,
    return
  }
  func.func @transform_0(%arg0: i32) -> (i32, i32) {
    %c0_i32 = arith.constant 0 : i32
    %c0_i32_0 = arith.constant 0 : i32
    return %c0_i32, %arg0 : i32, i32
  }
  func.func @transform_1(%arg0: i32) -> (i32, i32) {
    %c0_i32 = arith.constant 0 : i32
    %c0_i32_0 = arith.constant 0 : i32
    %c0_i32_1 = arith.constant 0 : i32
    return %c0_i32, %c0_i32_0 : i32, i32
  }
  func.func @transform_2(%arg0: i32) -> (i32, i32) {
    %c0_i32 = arith.constant 0 : i32
    %c0_i32_0 = arith.constant 0 : i32
    %c0_i32_1 = arith.constant 0 : i32
    return %c0_i32, %c0_i32_0 : i32, i32
  }
  func.func @transform_3(%arg0: i32) -> (i32, i32) {
    %c0_i32 = arith.constant 0 : i32
    %c0_i32_0 = arith.constant 0 : i32
    %c0_i32_1 = arith.constant 0 : i32
    return %c0_i32, %c0_i32_0 : i32, i32
  }
  func.func @transform_4(%arg0: i32) -> (i32, i32) {
    %c0_i32 = arith.constant 0 : i32
    %c0_i32_0 = arith.constant 0 : i32
    return %c0_i32, %arg0 : i32, i32
  }
}

</mosaic_0001>

<llo_original>
// kernel: custom-call.2
$region0: #{custom-call.2}
  %s0 = inlined_call_operand.vmem [shape: f32[4,32,32], index: 0, kind: input, shape index: {}]
  %s1 = inlined_call_operand.vmem [shape: f32[4,32,32], index: 1, kind: output, shape index: {}]
  $region1: #{custom-call.2} parent=0
    #allocation0 [shape = 'u8[32768]{0}', space=vmem, size = 0x8000, scoped, tag = 'operand span for operand 0']
    #allocation1 [shape = 'u8[32768]{0}', space=vmem, size = 0x8000, scoped, tag = 'operand span for operand 1']
    loop: start=0, step=1, limit=6
    $region2: #{custom-call.2} parent=1 // loop_pre_header
      _
    $region3: #{custom-call.2} parent=1 // loop_header
      %s3 = sphi 0, %s7
      %p4 = scmp.ge.s32.totalorder %s3, 6
      %s10 = sphi 0, %s29
      %s11 = sphi 0, %s25
      %s12 = sphi 0, %s21
      %s13 = sphi 0, %s10
      %s14 = sphi 0, %s11
      %s15 = sphi 0, %s12
      %s16 = sphi 0, %s13
      %s17 = sphi 0, %s14
      %s18 = sphi 0, %s15
    $region4: #{custom-call.2} parent=1 // loop_header_branch
      %6 = sbr.rel (%p4) target = $region8
    $region5: #{custom-call.2} parent=1 // loop_body
      %s8 = ssub.s32 %s3, 1
      %s9 = ssub.s32 %s3, 2
      %s19 = sadd.s32 1, %s12
      %p20 = scmp.ge.s32.totalorder %s19, 1
      %s21 = scalar_select %p20, 0, %s19
      %s22 = sadd.s32 1, %s11
      %s23 = scalar_select %p20, %s22, %s11
      %p24 = scmp.ge.s32.totalorder %s23, 1
      %s25 = scalar_select %p24, 0, %s23
      %s26 = sadd.s32 1, %s10
      %s27 = scalar_select %p24, %s26, %s10
      %p28 = scmp.ge.s32.totalorder %s27, 4
      %s29 = scalar_select %p28, 0, %s27
      %p30 = scmp.le.s32.totalorder 1, %s3
      %p31 = scmp.lt.s32.totalorder %s3, 5
      %p32 = pnand %p30, %p31
      %p33 = pneg %p32
      // Predicated region
      $region9: #{custom-call.2} parent=5 // pred_check
        _
      $region10: #{custom-call.2} parent=5 // pred_check_branch
        %35 = sbr.rel (%p32) target = $region12
      $region11: #{custom-call.2} parent=5 // pred_region
        %s36 = ssub.s32 %s3, 1
      $region12: #{custom-call.2} parent=5 // pred_fallthru
        _
      %p37 = scmp.lt.s32.totalorder %s3, 4
      // Predicated region
      $region13: #{custom-call.2} parent=5 // pred_check
        %p38 = pneg %p37
      $region14: #{custom-call.2} parent=5 // pred_check_branch
        %40 = sbr.rel (%p38) target = $region16
      $region15: #{custom-call.2} parent=5 // pred_region
        %s41 = sand.u32 %s3, 1
        %s42 = sand.u32 %s3, 1
        %s43 = smul.addr %s42, 32
        %s44 = scalar_lea.vmem [#allocation0], %s43
        %s45 = sadd.s32 %s12, %s11
        %s46 = smul.addr %s10, 4
        %s47 = sadd.s32 %s45, %s46
        %s48 = smul.addr %s47, 8
        %s49 = scalar_lea.vmem %s0, %s48
        // Predicated region
        $region17: #{custom-call.2} parent=15 // pred_check
          _
        $region18: #{custom-call.2} parent=15 // pred_check_branch
          %51 = sbr.rel (0) target = $region20
        $region19: #{custom-call.2} parent=15 // pred_region
          // Predicated region
          $region21: #{custom-call.2} parent=19 // pred_check
            _
          $region22: #{custom-call.2} parent=19 // pred_check_branch
            %53 = sbr.rel (0) target = $region24
          $region23: #{custom-call.2} parent=19 // pred_region
            // Predicated region
            $region36: #{custom-call.2} parent=23 // pred_check
              _
            $region37: #{custom-call.2} parent=23 // pred_check_branch
              %74 = sbr.rel (0) target = $region39
            $region38: #{custom-call.2} parent=23 // pred_region
              loop: start=0, step=1, limit=1
              $region40: #{custom-call.2} parent=38 // loop_pre_header
                _
              $region41: #{custom-call.2} parent=38 // loop_header
                %s76 = sphi 0, %s80
                %p77 = scmp.ge.s32.totalorder %s76, 1
                %s81 = sphi %s49, %s49
                %s82 = sphi %s44, %s44
              $region42: #{custom-call.2} parent=38 // loop_header_branch
                %79 = sbr.rel (%p77) target = $region46
              $region43: #{custom-call.2} parent=38 // loop_body
                %v83 = vld [vmem:[%s81] sm:$0xff]
                %84 = vst [vmem:[%s82] sm:$0xff] %v83
                %v85 = vld [vmem:[%s81 + $0x8] sm:$0xff]
                %86 = vst [vmem:[%s82 + $0x8] sm:$0xff] %v85
                %v87 = vld [vmem:[%s81 + $0x10] sm:$0xff]
                %88 = vst [vmem:[%s82 + $0x10] sm:$0xff] %v87
                %v89 = vld [vmem:[%s81 + $0x18] sm:$0xff]
                %90 = vst [vmem:[%s82 + $0x18] sm:$0xff] %v89
              $region44: #{custom-call.2} parent=38 // loop_footer
                %s80 = sadd.s32 1, %s76
              $region45: #{custom-call.2} parent=38 // loop_footer_branch
                %75 = sbr.rel target = $region41
              $region46: #{custom-call.2} parent=38 // loop_exit
                _
            $region39: #{custom-call.2} parent=23 // pred_fallthru
              _
            // Predicated region
            $region47: #{custom-call.2} parent=23 // pred_check
              _
            $region48: #{custom-call.2} parent=23 // pred_check_branch
              %92 = sbr.rel target = $region50
            $region49: #{custom-call.2} parent=23 // pred_region
              _
            $region50: #{custom-call.2} parent=23 // pred_fallthru
              _
          $region24: #{custom-call.2} parent=19 // pred_fallthru
            _
          // Predicated region
          $region25: #{custom-call.2} parent=19 // pred_check
            _
          $region26: #{custom-call.2} parent=19 // pred_check_branch
            %55 = sbr.rel target = $region28
          $region27: #{custom-call.2} parent=19 // pred_region
            loop: start=0, step=1, limit=1
            $region29: #{custom-call.2} parent=27 // loop_pre_header
              _
            $region30: #{custom-call.2} parent=27 // loop_header
              %s58 = sphi 0, %s62
              %p59 = scmp.ge.s32.totalorder %s58, 1
              %s63 = sphi %s49, %s49
              %s64 = sphi %s44, %s44
            $region31: #{custom-call.2} parent=27 // loop_header_branch
              %61 = sbr.rel (%p59) target = $region35
            $region32: #{custom-call.2} parent=27 // loop_body
              %v65 = vld [vmem:[%s63] sm:$0xff]
              %66 = vst [vmem:[%s64] sm:$0xff] %v65
              %v67 = vld [vmem:[%s63 + $0x8] sm:$0xff]
              %68 = vst [vmem:[%s64 + $0x8] sm:$0xff] %v67
              %v69 = vld [vmem:[%s63 + $0x10] sm:$0xff]
              %70 = vst [vmem:[%s64 + $0x10] sm:$0xff] %v69
              %v71 = vld [vmem:[%s63 + $0x18] sm:$0xff]
              %72 = vst [vmem:[%s64 + $0x18] sm:$0xff] %v71
            $region33: #{custom-call.2} parent=27 // loop_footer
              %s62 = sadd.s32 1, %s58
            $region34: #{custom-call.2} parent=27 // loop_footer_branch
              %57 = sbr.rel target = $region30
            $region35: #{custom-call.2} parent=27 // loop_exit
              _
          $region28: #{custom-call.2} parent=19 // pred_fallthru
            _
        $region20: #{custom-call.2} parent=15 // pred_fallthru
          _
        %93 = vnop
      $region16: #{custom-call.2} parent=5 // pred_fallthru
        _
      %p94 = scmp.le.s32.totalorder 1, %s3
      %p95 = scmp.lt.s32.totalorder %s3, 5
      %p96 = pnand %p94, %p95
      %p97 = pneg %p96
      // Predicated region
      $region51: #{custom-call.2} parent=5 // pred_check
        _
      $region52: #{custom-call.2} parent=5 // pred_check_branch
        %99 = sbr.rel (%p96) target = $region54
      $region53: #{custom-call.2} parent=5 // pred_region
        %s100 = ssub.s32 %s3, 1
        %s101 = sand.u32 %s8, 1
        %s102 = sand.u32 %s8, 1
        %s103 = smul.addr %s102, 32
        %s104 = scalar_lea.vmem [#allocation0], %s103
        %s105 = sand.u32 %s8, 1
        %s106 = sand.u32 %s8, 1
        %s107 = smul.addr %s106, 32
        %s108 = scalar_lea.vmem [#allocation0], %s107
        %s109 = sand.u32 %s8, 1
        %s110 = sand.u32 %s8, 1
        %s111 = smul.addr %s110, 32
        %s112 = scalar_lea.vmem [#allocation1], %s111
        %113 = vst [vmem:[%s112] sm:$0xff] 0.0
        %s114 = scalar_lea.vmem %s112, 8 [#allocation1]
        %115 = vst [vmem:[%s114] sm:$0xff] 0.0
        %s116 = scalar_lea.vmem %s112, 16 [#allocation1]
        %117 = vst [vmem:[%s116] sm:$0xff] 0.0
        %s118 = scalar_lea.vmem %s112, 24 [#allocation1]
        %119 = vst [vmem:[%s118] sm:$0xff] 0.0
        %vm120 = vcmask 7168
        %v121 = vld [vmem:[%s112] ss:$0 sm:$0xff]
        %v122 = vld [vmem:[%s104] ss:$0 sm:$0xff]
        %v123 = vmul.f32 %v121, %v121
        %124 = vadd.xlane.f32.xlu0 %v123
        %v125 = vpop.xlane.xlu0 %124
        %v126 = vsub.f32 %v122, %v125
        %v127 = vrsqrt.pop %v126
        %v128 = vld [vmem:[%s104] sm:$0xff]
        %v129 = vld [vmem:[%s112] sm:$0xff]
        %v130 = vmul.f32 %v129, %v121
        %131 = vadd.xlane.f32.xlu0 %v130
        %v132 = vpop.xlane.xlu0 %131
        %v133 = vsub.f32 %v128, %v132
        %v134 = vmul.f32 %v133, %v127
        %v135 = vsel %vm120, %v134, 0.0
        %v136 = vadd.f32 %v129, %v135
        %137 = vst [vmem:[%s112] sm:$0xff] %v136
        %s138 = scalar_lea.vmem %s104, 8 [#allocation0]
        %v139 = vld [vmem:[%s138] sm:$0xff]
        %s140 = scalar_lea.vmem %s112, 8 [#allocation1]
        %v141 = vld [vmem:[%s140] sm:$0xff]
        %v142 = vmul.f32 %v141, %v121
        %143 = vadd.xlane.f32.xlu0 %v142
        %v144 = vpop.xlane.xlu0 %143
        %v145 = vsub.f32 %v139, %v144
        %v146 = vmul.f32 %v145, %v127
        %v147 = vsel %vm120, %v146, 0.0
        %v148 = vadd.f32 %v141, %v147
        %s149 = scalar_lea.vmem %s112, 8 [#allocation1]
        %150 = vst [vmem:[%s149] sm:$0xff] %v148
        %s151 = scalar_lea.vmem %s104, 16 [#allocation0]
        %v152 = vld [vmem:[%s151] sm:$0xff]
        %s153 = scalar_lea.vmem %s112, 16 [#allocation1]
        %v154 = vld [vmem:[%s153] sm:$0xff]
        %v155 = vmul.f32 %v154, %v121
        %156 = vadd.xlane.f32.xlu0 %v155
        %v157 = vpop.xlane.xlu0 %156
        %v158 = vsub.f32 %v152, %v157
        %v159 = vmul.f32 %v158, %v127
        %v160 = vsel %vm120, %v159, 0.0
        %v161 = vadd.f32 %v154, %v160
        %s162 = scalar_lea.vmem %s112, 16 [#allocation1]
        %163 = vst [vmem:[%s162] sm:$0xff] %v161
        %s164 = scalar_lea.vmem %s104, 24 [#allocation0]
        %v165 = vld [vmem:[%s164] sm:$0xff]
        %s166 = scalar_lea.vmem %s112, 24 [#allocation1]
        %v167 = vld [vmem:[%s166] sm:$0xff]
        %v168 = vmul.f32 %v167, %v121
        %169 = vadd.xlane.f32.xlu0 %v168
        %v170 = vpop.xlane.xlu0 %169
        %v171 = vsub.f32 %v165, %v170
        %v172 = vmul.f32 %v171, %v127
        %v173 = vsel %vm120, %v172, 0.0
        %v174 = vadd.f32 %v167, %v173
        %s175 = scalar_lea.vmem %s112, 24 [#allocation1]
        %176 = vst [vmem:[%s175] sm:$0xff] %v174
        %vm177 = vcmask 15368
        %s178 = scalar_lea.vmem %s112, 1 [#allocation1]
        %v179 = vld [vmem:[%s178] ss:$0 sm:$0xff]
        %s180 = scalar_lea.vmem %s104, 1 [#allocation0]
        %v181 = vld [vmem:[%s180] ss:$0 sm:$0xff]
        %v182 = vmul.f32 %v179, %v179
        %183 = vadd.xlane.f32.xlu0 %v182
        %v184 = vpop.xlane.xlu0 %183
        %v185 = vsub.f32 %v181, %v184
        %v186 = vrsqrt.pop %v185
        %v187 = vld [vmem:[%s104] sm:$0xff]
        %v188 = vld [vmem:[%s112] sm:$0xff]
        %v189 = vmul.f32 %v188, %v179
        %190 = vadd.xlane.f32.xlu0 %v189
        %v191 = vpop.xlane.xlu0 %190
        %v192 = vsub.f32 %v187, %v191
        %v193 = vmul.f32 %v192, %v186
        %vm194 = vcmask 1047553
        %vm195 = vmand %vm177, %vm194
        %v196 = vsel %vm195, %v193, 0.0
        %v197 = vadd.f32 %v188, %v196
        %198 = vst [vmem:[%s112] sm:$0xff] %v197
        %s199 = scalar_lea.vmem %s104, 8 [#allocation0]
        %v200 = vld [vmem:[%s199] sm:$0xff]
        %s201 = scalar_lea.vmem %s112, 8 [#allocation1]
        %v202 = vld [vmem:[%s201] sm:$0xff]
        %v203 = vmul.f32 %v202, %v179
        %204 = vadd.xlane.f32.xlu0 %v203
        %v205 = vpop.xlane.xlu0 %204
        %v206 = vsub.f32 %v200, %v205
        %v207 = vmul.f32 %v206, %v186
        %v208 = vsel %vm177, %v207, 0.0
        %v209 = vadd.f32 %v202, %v208
        %s210 = scalar_lea.vmem %s112, 8 [#allocation1]
        %211 = vst [vmem:[%s210] sm:$0xff] %v209
        %s212 = scalar_lea.vmem %s104, 16 [#allocation0]
        %v213 = vld [vmem:[%s212] sm:$0xff]
        %s214 = scalar_lea.vmem %s112, 16 [#allocation1]
        %v215 = vld [vmem:[%s214] sm:$0xff]
        %v216 = vmul.f32 %v215, %v179
        %217 = vadd.xlane.f32.xlu0 %v216
        %v218 = vpop.xlane.xlu0 %217
        %v219 = vsub.f32 %v213, %v218
        %v220 = vmul.f32 %v219, %v186
        %v221 = vsel %vm177, %v220, 0.0
        %v222 = vadd.f32 %v215, %v221
        %s223 = scalar_lea.vmem %s112, 16 [#allocation1]
        %224 = vst [vmem:[%s223] sm:$0xff] %v222
        %s225 = scalar_lea.vmem %s104, 24 [#allocation0]
        %v226 = vld [vmem:[%s225] sm:$0xff]
        %s227 = scalar_lea.vmem %s112, 24 [#allocation1]
        %v228 = vld [vmem:[%s227] sm:$0xff]
        %v229 = vmul.f32 %v228, %v179
        %230 = vadd.xlane.f32.xlu0 %v229
        %v231 = vpop.xlane.xlu0 %230
        %v232 = vsub.f32 %v226, %v231
        %v233 = vmul.f32 %v232, %v186
        %v234 = vsel %vm177, %v233, 0.0
        %v235 = vadd.f32 %v228, %v234
        %s236 = scalar_lea.vmem %s112, 24 [#allocation1]
        %237 = vst [vmem:[%s236] sm:$0xff] %v235
        %vm238 = vcmask 23568
        %s239 = scalar_lea.vmem %s112, 2 [#allocation1]
        %v240 = vld [vmem:[%s239] ss:$0 sm:$0xff]
        %s241 = scalar_lea.vmem %s104, 2 [#allocation0]
        %v242 = vld [vmem:[%s241] ss:$0 sm:$0xff]
        %v243 = vmul.f32 %v240, %v240
        %244 = vadd.xlane.f32.xlu0 %v243
        %v245 = vpop.xlane.xlu0 %244
        %v246 = vsub.f32 %v242, %v245
        %v247 = vrsqrt.pop %v246
        %v248 = vld [vmem:[%s104] sm:$0xff]
        %v249 = vld [vmem:[%s112] sm:$0xff]
        %v250 = vmul.f32 %v249, %v240
        %251 = vadd.xlane.f32.xlu0 %v250
        %v252 = vpop.xlane.xlu0 %251
        %v253 = vsub.f32 %v248, %v252
        %v254 = vmul.f32 %v253, %v247
        %vm255 = vcmask 1047554
        %vm256 = vmand %vm238, %vm255
        %v257 = vsel %vm256, %v254, 0.0
        %v258 = vadd.f32 %v249, %v257
        %259 = vst [vmem:[%s112] sm:$0xff] %v258
        %s260 = scalar_lea.vmem %s104, 8 [#allocation0]
        %v261 = vld [vmem:[%s260] sm:$0xff]
        %s262 = scalar_lea.vmem %s112, 8 [#allocation1]
        %v263 = vld [vmem:[%s262] sm:$0xff]
        %v264 = vmul.f32 %v263, %v240
        %265 = vadd.xlane.f32.xlu0 %v264
        %v266 = vpop.xlane.xlu0 %265
        %v267 = vsub.f32 %v261, %v266
        %v268 = vmul.f32 %v267, %v247
        %v269 = vsel %vm238, %v268, 0.0
        %v270 = vadd.f32 %v263, %v269
        %s271 = scalar_lea.vmem %s112, 8 [#allocation1]
        %272 = vst [vmem:[%s271] sm:$0xff] %v270
        %s273 = scalar_lea.vmem %s104, 16 [#allocation0]
        %v274 = vld [vmem:[%s273] sm:$0xff]
        %s275 = scalar_lea.vmem %s112, 16 [#allocation1]
        %v276 = vld [vmem:[%s275] sm:$0xff]
        %v277 = vmul.f32 %v276, %v240
        %278 = vadd.xlane.f32.xlu0 %v277
        %v279 = vpop.xlane.xlu0 %278
        %v280 = vsub.f32 %v274, %v279
        %v281 = vmul.f32 %v280, %v247
        %v282 = vsel %vm238, %v281, 0.0
        %v283 = vadd.f32 %v276, %v282
        %s284 = scalar_lea.vmem %s112, 16 [#allocation1]
        %285 = vst [vmem:[%s284] sm:$0xff] %v283
        %s286 = scalar_lea.vmem %s104, 24 [#allocation0]
        %v287 = vld [vmem:[%s286] sm:$0xff]
        %s288 = scalar_lea.vmem %s112, 24 [#allocation1]
        %v289 = vld [vmem:[%s288] sm:$0xff]
        %v290 = vmul.f32 %v289, %v240
        %291 = vadd.xlane.f32.xlu0 %v290
        %v292 = vpop.xlane.xlu0 %291
        %v293 = vsub.f32 %v287, %v292
        %v294 = vmul.f32 %v293, %v247
        %v295 = vsel %vm238, %v294, 0.0
        %v296 = vadd.f32 %v289, %v295
        %s297 = scalar_lea.vmem %s112, 24 [#allocation1]
        %298 = vst [vmem:[%s297] sm:$0xff] %v296
        %vm299 = vcmask 31768
        %s300 = scalar_lea.vmem %s112, 3 [#allocation1]
        %v301 = vld [vmem:[%s300] ss:$0 sm:$0xff]
        %s302 = scalar_lea.vmem %s104, 3 [#allocation0]
        %v303 = vld [vmem:[%s302] ss:$0 sm:$0xff]
        %v304 = vmul.f32 %v301, %v301
        %305 = vadd.xlane.f32.xlu0 %v304
        %v306 = vpop.xlane.xlu0 %305
        %v307 = vsub.f32 %v303, %v306
        %v308 = vrsqrt.pop %v307
        %v309 = vld [vmem:[%s104] sm:$0xff]
        %v310 = vld [vmem:[%s112] sm:$0xff]
        %v311 = vmul.f32 %v310, %v301
        %312 = vadd.xlane.f32.xlu0 %v311
        %v313 = vpop.xlane.xlu0 %312
        %v314 = vsub.f32 %v309, %v313
        %v315 = vmul.f32 %v314, %v308
        %vm316 = vcmask 1047555
        %vm317 = vmand %vm299, %vm316
        %v318 = vsel %vm317, %v315, 0.0
        %v319 = vadd.f32 %v310, %v318
        %320 = vst [vmem:[%s112] sm:$0xff] %v319
        %s321 = scalar_lea.vmem %s104, 8 [#allocation0]
        %v322 = vld [vmem:[%s321] sm:$0xff]
        %s323 = scalar_lea.vmem %s112, 8 [#allocation1]
        %v324 = vld [vmem:[%s323] sm:$0xff]
        %v325 = vmul.f32 %v324, %v301
        %326 = vadd.xlane.f32.xlu0 %v325
        %v327 = vpop.xlane.xlu0 %326
        %v328 = vsub.f32 %v322, %v327
        %v329 = vmul.f32 %v328, %v308
        %v330 = vsel %vm299, %v329, 0.0
        %v331 = vadd.f32 %v324, %v330
        %s332 = scalar_lea.vmem %s112, 8 [#allocation1]
        %333 = vst [vmem:[%s332] sm:$0xff] %v331
        %s334 = scalar_lea.vmem %s104, 16 [#allocation0]
        %v335 = vld [vmem:[%s334] sm:$0xff]
        %s336 = scalar_lea.vmem %s112, 16 [#allocation1]
        %v337 = vld [vmem:[%s336] sm:$0xff]
        %v338 = vmul.f32 %v337, %v301
        %339 = vadd.xlane.f32.xlu0 %v338
        %v340 = vpop.xlane.xlu0 %339
        %v341 = vsub.f32 %v335, %v340
        %v342 = vmul.f32 %v341, %v308
        %v343 = vsel %vm299, %v342, 0.0
        %v344 = vadd.f32 %v337, %v343
        %s345 = scalar_lea.vmem %s112, 16 [#allocation1]
        %346 = vst [vmem:[%s345] sm:$0xff] %v344
        %s347 = scalar_lea.vmem %s104, 24 [#allocation0]
        %v348 = vld [vmem:[%s347] sm:$0xff]
        %s349 = scalar_lea.vmem %s112, 24 [#allocation1]
        %v350 = vld [vmem:[%s349] sm:$0xff]
        %v351 = vmul.f32 %v350, %v301
        %352 = vadd.xlane.f32.xlu0 %v351
        %v353 = vpop.xlane.xlu0 %352
        %v354 = vsub.f32 %v348, %v353
        %v355 = vmul.f32 %v354, %v308
        %v356 = vsel %vm299, %v355, 0.0
        %v357 = vadd.f32 %v350, %v356
        %s358 = scalar_lea.vmem %s112, 24 [#allocation1]
        %359 = vst [vmem:[%s358] sm:$0xff] %v357
        %vm360 = vcmask 39968
        %s361 = scalar_lea.vmem %s112, 4 [#allocation1]
        %v362 = vld [vmem:[%s361] ss:$0 sm:$0xff]
        %s363 = scalar_lea.vmem %s104, 4 [#allocation0]
        %v364 = vld [vmem:[%s363] ss:$0 sm:$0xff]
        %v365 = vmul.f32 %v362, %v362
        %366 = vadd.xlane.f32.xlu0 %v365
        %v367 = vpop.xlane.xlu0 %366
        %v368 = vsub.f32 %v364, %v367
        %v369 = vrsqrt.pop %v368
        %v370 = vld [vmem:[%s104] sm:$0xff]
        %v371 = vld [vmem:[%s112] sm:$0xff]
        %v372 = vmul.f32 %v371, %v362
        %373 = vadd.xlane.f32.xlu0 %v372
        %v374 = vpop.xlane.xlu0 %373
        %v375 = vsub.f32 %v370, %v374
        %v376 = vmul.f32 %v375, %v369
        %vm377 = vcmask 1047556
        %vm378 = vmand %vm360, %vm377
        %v379 = vsel %vm378, %v376, 0.0
        %v380 = vadd.f32 %v371, %v379
        %381 = vst [vmem:[%s112] sm:$0xff] %v380
        %s382 = scalar_lea.vmem %s104, 8 [#allocation0]
        %v383 = vld [vmem:[%s382] sm:$0xff]
        %s384 = scalar_lea.vmem %s112, 8 [#allocation1]
        %v385 = vld [vmem:[%s384] sm:$0xff]
        %v386 = vmul.f32 %v385, %v362
        %387 = vadd.xlane.f32.xlu0 %v386
        %v388 = vpop.xlane.xlu0 %387
        %v389 = vsub.f32 %v383, %v388
        %v390 = vmul.f32 %v389, %v369
        %v391 = vsel %vm360, %v390, 0.0
        %v392 = vadd.f32 %v385, %v391
        %s393 = scalar_lea.vmem %s112, 8 [#allocation1]
        %394 = vst [vmem:[%s393] sm:$0xff] %v392
        %s395 = scalar_lea.vmem %s104, 16 [#allocation0]
        %v396 = vld [vmem:[%s395] sm:$0xff]
        %s397 = scalar_lea.vmem %s112, 16 [#allocation1]
        %v398 = vld [vmem:[%s397] sm:$0xff]
        %v399 = vmul.f32 %v398, %v362
        %400 = vadd.xlane.f32.xlu0 %v399
        %v401 = vpop.xlane.xlu0 %400
        %v402 = vsub.f32 %v396, %v401
        %v403 = vmul.f32 %v402, %v369
        %v404 = vsel %vm360, %v403, 0.0
        %v405 = vadd.f32 %v398, %v404
        %s406 = scalar_lea.vmem %s112, 16 [#allocation1]
        %407 = vst [vmem:[%s406] sm:$0xff] %v405
        %s408 = scalar_lea.vmem %s104, 24 [#allocation0]
        %v409 = vld [vmem:[%s408] sm:$0xff]
        %s410 = scalar_lea.vmem %s112, 24 [#allocation1]
        %v411 = vld [vmem:[%s410] sm:$0xff]
        %v412 = vmul.f32 %v411, %v362
        %413 = vadd.xlane.f32.xlu0 %v412
        %v414 = vpop.xlane.xlu0 %413
        %v415 = vsub.f32 %v409, %v414
        %v416 = vmul.f32 %v415, %v369
        %v417 = vsel %vm360, %v416, 0.0
        %v418 = vadd.f32 %v411, %v417
        %s419 = scalar_lea.vmem %s112, 24 [#allocation1]
        %420 = vst [vmem:[%s419] sm:$0xff] %v418
        %vm421 = vcmask 48168
        %s422 = scalar_lea.vmem %s112, 5 [#allocation1]
        %v423 = vld [vmem:[%s422] ss:$0 sm:$0xff]
        %s424 = scalar_lea.vmem %s104, 5 [#allocation0]
        %v425 = vld [vmem:[%s424] ss:$0 sm:$0xff]
        %v426 = vmul.f32 %v423, %v423
        %427 = vadd.xlane.f32.xlu0 %v426
        %v428 = vpop.xlane.xlu0 %427
        %v429 = vsub.f32 %v425, %v428
        %v430 = vrsqrt.pop %v429
        %v431 = vld [vmem:[%s104] sm:$0xff]
        %v432 = vld [vmem:[%s112] sm:$0xff]
        %v433 = vmul.f32 %v432, %v423
        %434 = vadd.xlane.f32.xlu0 %v433
        %v435 = vpop.xlane.xlu0 %434
        %v436 = vsub.f32 %v431, %v435
        %v437 = vmul.f32 %v436, %v430
        %vm438 = vcmask 1047557
        %vm439 = vmand %vm421, %vm438
        %v440 = vsel %vm439, %v437, 0.0
        %v441 = vadd.f32 %v432, %v440
        %442 = vst [vmem:[%s112] sm:$0xff] %v441
        %s443 = scalar_lea.vmem %s104, 8 [#allocation0]
        %v444 = vld [vmem:[%s443] sm:$0xff]
        %s445 = scalar_lea.vmem %s112, 8 [#allocation1]
        %v446 = vld [vmem:[%s445] sm:$0xff]
        %v447 = vmul.f32 %v446, %v423
        %448 = vadd.xlane.f32.xlu0 %v447
        %v449 = vpop.xlane.xlu0 %448
        %v450 = vsub.f32 %v444, %v449
        %v451 = vmul.f32 %v450, %v430
        %v452 = vsel %vm421, %v451, 0.0
        %v453 = vadd.f32 %v446, %v452
        %s454 = scalar_lea.vmem %s112, 8 [#allocation1]
        %455 = vst [vmem:[%s454] sm:$0xff] %v453
        %s456 = scalar_lea.vmem %s104, 16 [#allocation0]
        %v457 = vld [vmem:[%s456] sm:$0xff]
        %s458 = scalar_lea.vmem %s112, 16 [#allocation1]
        %v459 = vld [vmem:[%s458] sm:$0xff]
        %v460 = vmul.f32 %v459, %v423
        %461 = vadd.xlane.f32.xlu0 %v460
        %v462 = vpop.xlane.xlu0 %461
        %v463 = vsub.f32 %v457, %v462
        %v464 = vmul.f32 %v463, %v430
        %v465 = vsel %vm421, %v464, 0.0
        %v466 = vadd.f32 %v459, %v465
        %s467 = scalar_lea.vmem %s112, 16 [#allocation1]
        %468 = vst [vmem:[%s467] sm:$0xff] %v466
        %s469 = scalar_lea.vmem %s104, 24 [#allocation0]
        %v470 = vld [vmem:[%s469] sm:$0xff]
        %s471 = scalar_lea.vmem %s112, 24 [#allocation1]
        %v472 = vld [vmem:[%s471] sm:$0xff]
        %v473 = vmul.f32 %v472, %v423
        %474 = vadd.xlane.f32.xlu0 %v473
        %v475 = vpop.xlane.xlu0 %474
        %v476 = vsub.f32 %v470, %v475
        %v477 = vmul.f32 %v476, %v430
        %v478 = vsel %vm421, %v477, 0.0
        %v479 = vadd.f32 %v472, %v478
        %s480 = scalar_lea.vmem %s112, 24 [#allocation1]
        %481 = vst [vmem:[%s480] sm:$0xff] %v479
        %vm482 = vcmask 56368
        %s483 = scalar_lea.vmem %s112, 6 [#allocation1]
        %v484 = vld [vmem:[%s483] ss:$0 sm:$0xff]
        %s485 = scalar_lea.vmem %s104, 6 [#allocation0]
        %v486 = vld [vmem:[%s485] ss:$0 sm:$0xff]
        %v487 = vmul.f32 %v484, %v484
        %488 = vadd.xlane.f32.xlu0 %v487
        %v489 = vpop.xlane.xlu0 %488
        %v490 = vsub.f32 %v486, %v489
        %v491 = vrsqrt.pop %v490
        %v492 = vld [vmem:[%s104] sm:$0xff]
        %v493 = vld [vmem:[%s112] sm:$0xff]
        %v494 = vmul.f32 %v493, %v484
        %495 = vadd.xlane.f32.xlu0 %v494
        %v496 = vpop.xlane.xlu0 %495
        %v497 = vsub.f32 %v492, %v496
        %v498 = vmul.f32 %v497, %v491
        %vm499 = vcmask 1047558
        %vm500 = vmand %vm482, %vm499
        %v501 = vsel %vm500, %v498, 0.0
        %v502 = vadd.f32 %v493, %v501
        %503 = vst [vmem:[%s112] sm:$0xff] %v502
        %s504 = scalar_lea.vmem %s104, 8 [#allocation0]
        %v505 = vld [vmem:[%s504] sm:$0xff]
        %s506 = scalar_lea.vmem %s112, 8 [#allocation1]
        %v507 = vld [vmem:[%s506] sm:$0xff]
        %v508 = vmul.f32 %v507, %v484
        %509 = vadd.xlane.f32.xlu0 %v508
        %v510 = vpop.xlane.xlu0 %509
        %v511 = vsub.f32 %v505, %v510
        %v512 = vmul.f32 %v511, %v491
        %v513 = vsel %vm482, %v512, 0.0
        %v514 = vadd.f32 %v507, %v513
        %s515 = scalar_lea.vmem %s112, 8 [#allocation1]
        %516 = vst [vmem:[%s515] sm:$0xff] %v514
        %s517 = scalar_lea.vmem %s104, 16 [#allocation0]
        %v518 = vld [vmem:[%s517] sm:$0xff]
        %s519 = scalar_lea.vmem %s112, 16 [#allocation1]
        %v520 = vld [vmem:[%s519] sm:$0xff]
        %v521 = vmul.f32 %v520, %v484
        %522 = vadd.xlane.f32.xlu0 %v521
        %v523 = vpop.xlane.xlu0 %522
        %v524 = vsub.f32 %v518, %v523
        %v525 = vmul.f32 %v524, %v491
        %v526 = vsel %vm482, %v525, 0.0
        %v527 = vadd.f32 %v520, %v526
        %s528 = scalar_lea.vmem %s112, 16 [#allocation1]
        %529 = vst [vmem:[%s528] sm:$0xff] %v527
        %s530 = scalar_lea.vmem %s104, 24 [#allocation0]
        %v531 = vld [vmem:[%s530] sm:$0xff]
        %s532 = scalar_lea.vmem %s112, 24 [#allocation1]
        %v533 = vld [vmem:[%s532] sm:$0xff]
        %v534 = vmul.f32 %v533, %v484
        %535 = vadd.xlane.f32.xlu0 %v534
        %v536 = vpop.xlane.xlu0 %535
        %v537 = vsub.f32 %v531, %v536
        %v538 = vmul.f32 %v537, %v491
        %v539 = vsel %vm482, %v538, 0.0
        %v540 = vadd.f32 %v533, %v539
        %s541 = scalar_lea.vmem %s112, 24 [#allocation1]
        %542 = vst [vmem:[%s541] sm:$0xff] %v540
        %vm543 = vcmask 64568
        %s544 = scalar_lea.vmem %s112, 7 [#allocation1]
        %v545 = vld [vmem:[%s544] ss:$0 sm:$0xff]
        %s546 = scalar_lea.vmem %s104, 7 [#allocation0]
        %v547 = vld [vmem:[%s546] ss:$0 sm:$0xff]
        %v548 = vmul.f32 %v545, %v545
        %549 = vadd.xlane.f32.xlu0 %v548
        %v550 = vpop.xlane.xlu0 %549
        %v551 = vsub.f32 %v547, %v550
        %v552 = vrsqrt.pop %v551
        %v553 = vld [vmem:[%s104] sm:$0xff]
        %v554 = vld [vmem:[%s112] sm:$0xff]
        %v555 = vmul.f32 %v554, %v545
        %556 = vadd.xlane.f32.xlu0 %v555
        %v557 = vpop.xlane.xlu0 %556
        %v558 = vsub.f32 %v553, %v557
        %v559 = vmul.f32 %v558, %v552
        %vm560 = vcmask 1047559
        %vm561 = vmand %vm543, %vm560
        %v562 = vsel %vm561, %v559, 0.0
        %v563 = vadd.f32 %v554, %v562
        %564 = vst [vmem:[%s112] sm:$0xff] %v563
        %s565 = scalar_lea.vmem %s104, 8 [#allocation0]
        %v566 = vld [vmem:[%s565] sm:$0xff]
        %s567 = scalar_lea.vmem %s112, 8 [#allocation1]
        %v568 = vld [vmem:[%s567] sm:$0xff]
        %v569 = vmul.f32 %v568, %v545
        %570 = vadd.xlane.f32.xlu0 %v569
        %v571 = vpop.xlane.xlu0 %570
        %v572 = vsub.f32 %v566, %v571
        %v573 = vmul.f32 %v572, %v552
        %v574 = vsel %vm543, %v573, 0.0
        %v575 = vadd.f32 %v568, %v574
        %s576 = scalar_lea.vmem %s112, 8 [#allocation1]
        %577 = vst [vmem:[%s576] sm:$0xff] %v575
        %s578 = scalar_lea.vmem %s104, 16 [#allocation0]
        %v579 = vld [vmem:[%s578] sm:$0xff]
        %s580 = scalar_lea.vmem %s112, 16 [#allocation1]
        %v581 = vld [vmem:[%s580] sm:$0xff]
        %v582 = vmul.f32 %v581, %v545
        %583 = vadd.xlane.f32.xlu0 %v582
        %v584 = vpop.xlane.xlu0 %583
        %v585 = vsub.f32 %v579, %v584
        %v586 = vmul.f32 %v585, %v552
        %v587 = vsel %vm543, %v586, 0.0
        %v588 = vadd.f32 %v581, %v587
        %s589 = scalar_lea.vmem %s112, 16 [#allocation1]
        %590 = vst [vmem:[%s589] sm:$0xff] %v588
        %s591 = scalar_lea.vmem %s104, 24 [#allocation0]
        %v592 = vld [vmem:[%s591] sm:$0xff]
        %s593 = scalar_lea.vmem %s112, 24 [#allocation1]
        %v594 = vld [vmem:[%s593] sm:$0xff]
        %v595 = vmul.f32 %v594, %v545
        %596 = vadd.xlane.f32.xlu0 %v595
        %v597 = vpop.xlane.xlu0 %596
        %v598 = vsub.f32 %v592, %v597
        %v599 = vmul.f32 %v598, %v552
        %v600 = vsel %vm543, %v599, 0.0
        %v601 = vadd.f32 %v594, %v600
        %s602 = scalar_lea.vmem %s112, 24 [#allocation1]
        %603 = vst [vmem:[%s602] sm:$0xff] %v601
        %vm604 = vcmask 72768
        %s605 = scalar_lea.vmem %s112, 8 [#allocation1]
        %v606 = vld [vmem:[%s605] ss:$0 sm:$0xff]
        %s607 = scalar_lea.vmem %s104, 8 [#allocation0]
        %v608 = vld [vmem:[%s607] ss:$0 sm:$0xff]
        %v609 = vmul.f32 %v606, %v606
        %610 = vadd.xlane.f32.xlu0 %v609
        %v611 = vpop.xlane.xlu0 %610
        %v612 = vsub.f32 %v608, %v611
        %v613 = vrsqrt.pop %v612
        %s614 = scalar_lea.vmem %s104, 8 [#allocation0]
        %v615 = vld [vmem:[%s614] sm:$0xff]
        %s616 = scalar_lea.vmem %s112, 8 [#allocation1]
        %v617 = vld [vmem:[%s616] sm:$0xff]
        %v618 = vmul.f32 %v617, %v606
        %619 = vadd.xlane.f32.xlu0 %v618
        %v620 = vpop.xlane.xlu0 %619
        %v621 = vsub.f32 %v615, %v620
        %v622 = vmul.f32 %v621, %v613
        %v623 = vsel %vm604, %v622, 0.0
        %v624 = vadd.f32 %v617, %v623
        %s625 = scalar_lea.vmem %s112, 8 [#allocation1]
        %626 = vst [vmem:[%s625] sm:$0xff] %v624
        %s627 = scalar_lea.vmem %s104, 16 [#allocation0]
        %v628 = vld [vmem:[%s627] sm:$0xff]
        %s629 = scalar_lea.vmem %s112, 16 [#allocation1]
        %v630 = vld [vmem:[%s629] sm:$0xff]
        %v631 = vmul.f32 %v630, %v606
        %632 = vadd.xlane.f32.xlu0 %v631
        %v633 = vpop.xlane.xlu0 %632
        %v634 = vsub.f32 %v628, %v633
        %v635 = vmul.f32 %v634, %v613
        %v636 = vsel %vm604, %v635, 0.0
        %v637 = vadd.f32 %v630, %v636
        %s638 = scalar_lea.vmem %s112, 16 [#allocation1]
        %639 = vst [vmem:[%s638] sm:$0xff] %v637
        %s640 = scalar_lea.vmem %s104, 24 [#allocation0]
        %v641 = vld [vmem:[%s640] sm:$0xff]
        %s642 = scalar_lea.vmem %s112, 24 [#allocation1]
        %v643 = vld [vmem:[%s642] sm:$0xff]
        %v644 = vmul.f32 %v643, %v606
        %645 = vadd.xlane.f32.xlu0 %v644
        %v646 = vpop.xlane.xlu0 %645
        %v647 = vsub.f32 %v641, %v646
        %v648 = vmul.f32 %v647, %v613
        %v649 = vsel %vm604, %v648, 0.0
        %v650 = vadd.f32 %v643, %v649
        %s651 = scalar_lea.vmem %s112, 24 [#allocation1]
        %652 = vst [vmem:[%s651] sm:$0xff] %v650
        %vm653 = vcmask 80968
        %s654 = scalar_lea.vmem %s112, 9 [#allocation1]
        %v655 = vld [vmem:[%s654] ss:$0 sm:$0xff]
        %s656 = scalar_lea.vmem %s104, 9 [#allocation0]
        %v657 = vld [vmem:[%s656] ss:$0 sm:$0xff]
        %v658 = vmul.f32 %v655, %v655
        %659 = vadd.xlane.f32.xlu0 %v658
        %v660 = vpop.xlane.xlu0 %659
        %v661 = vsub.f32 %v657, %v660
        %v662 = vrsqrt.pop %v661
        %s663 = scalar_lea.vmem %s104, 8 [#allocation0]
        %v664 = vld [vmem:[%s663] sm:$0xff]
        %s665 = scalar_lea.vmem %s112, 8 [#allocation1]
        %v666 = vld [vmem:[%s665] sm:$0xff]
        %v667 = vmul.f32 %v666, %v655
        %668 = vadd.xlane.f32.xlu0 %v667
        %v669 = vpop.xlane.xlu0 %668
        %v670 = vsub.f32 %v664, %v669
        %v671 = vmul.f32 %v670, %v662
        %vm672 = vcmask 1047553
        %vm673 = vmand %vm653, %vm672
        %v674 = vsel %vm673, %v671, 0.0
        %v675 = vadd.f32 %v666, %v674
        %s676 = scalar_lea.vmem %s112, 8 [#allocation1]
        %677 = vst [vmem:[%s676] sm:$0xff] %v675
        %s678 = scalar_lea.vmem %s104, 16 [#allocation0]
        %v679 = vld [vmem:[%s678] sm:$0xff]
        %s680 = scalar_lea.vmem %s112, 16 [#allocation1]
        %v681 = vld [vmem:[%s680] sm:$0xff]
        %v682 = vmul.f32 %v681, %v655
        %683 = vadd.xlane.f32.xlu0 %v682
        %v684 = vpop.xlane.xlu0 %683
        %v685 = vsub.f32 %v679, %v684
        %v686 = vmul.f32 %v685, %v662
        %v687 = vsel %vm653, %v686, 0.0
        %v688 = vadd.f32 %v681, %v687
        %s689 = scalar_lea.vmem %s112, 16 [#allocation1]
        %690 = vst [vmem:[%s689] sm:$0xff] %v688
        %s691 = scalar_lea.vmem %s104, 24 [#allocation0]
        %v692 = vld [vmem:[%s691] sm:$0xff]
        %s693 = scalar_lea.vmem %s112, 24 [#allocation1]
        %v694 = vld [vmem:[%s693] sm:$0xff]
        %v695 = vmul.f32 %v694, %v655
        %696 = vadd.xlane.f32.xlu0 %v695
        %v697 = vpop.xlane.xlu0 %696
        %v698 = vsub.f32 %v692, %v697
        %v699 = vmul.f32 %v698, %v662
        %v700 = vsel %vm653, %v699, 0.0
        %v701 = vadd.f32 %v694, %v700
        %s702 = scalar_lea.vmem %s112, 24 [#allocation1]
        %703 = vst [vmem:[%s702] sm:$0xff] %v701
        %vm704 = vcmask 89168
        %s705 = scalar_lea.vmem %s112, 10 [#allocation1]
        %v706 = vld [vmem:[%s705] ss:$0 sm:$0xff]
        %s707 = scalar_lea.vmem %s104, 10 [#allocation0]
        %v708 = vld [vmem:[%s707] ss:$0 sm:$0xff]
        %v709 = vmul.f32 %v706, %v706
        %710 = vadd.xlane.f32.xlu0 %v709
        %v711 = vpop.xlane.xlu0 %710
        %v712 = vsub.f32 %v708, %v711
        %v713 = vrsqrt.pop %v712
        %s714 = scalar_lea.vmem %s104, 8 [#allocation0]
        %v715 = vld [vmem:[%s714] sm:$0xff]
        %s716 = scalar_lea.vmem %s112, 8 [#allocation1]
        %v717 = vld [vmem:[%s716] sm:$0xff]
        %v718 = vmul.f32 %v717, %v706
        %719 = vadd.xlane.f32.xlu0 %v718
        %v720 = vpop.xlane.xlu0 %719
        %v721 = vsub.f32 %v715, %v720
        %v722 = vmul.f32 %v721, %v713
        %vm723 = vcmask 1047554
        %vm724 = vmand %vm704, %vm723
        %v725 = vsel %vm724, %v722, 0.0
        %v726 = vadd.f32 %v717, %v725
        %s727 = scalar_lea.vmem %s112, 8 [#allocation1]
        %728 = vst [vmem:[%s727] sm:$0xff] %v726
        %s729 = scalar_lea.vmem %s104, 16 [#allocation0]
        %v730 = vld [vmem:[%s729] sm:$0xff]
        %s731 = scalar_lea.vmem %s112, 16 [#allocation1]
        %v732 = vld [vmem:[%s731] sm:$0xff]
        %v733 = vmul.f32 %v732, %v706
        %734 = vadd.xlane.f32.xlu0 %v733
        %v735 = vpop.xlane.xlu0 %734
        %v736 = vsub.f32 %v730, %v735
        %v737 = vmul.f32 %v736, %v713
        %v738 = vsel %vm704, %v737, 0.0
        %v739 = vadd.f32 %v732, %v738
        %s740 = scalar_lea.vmem %s112, 16 [#allocation1]
        %741 = vst [vmem:[%s740] sm:$0xff] %v739
        %s742 = scalar_lea.vmem %s104, 24 [#allocation0]
        %v743 = vld [vmem:[%s742] sm:$0xff]
        %s744 = scalar_lea.vmem %s112, 24 [#allocation1]
        %v745 = vld [vmem:[%s744] sm:$0xff]
        %v746 = vmul.f32 %v745, %v706
        %747 = vadd.xlane.f32.xlu0 %v746
        %v748 = vpop.xlane.xlu0 %747
        %v749 = vsub.f32 %v743, %v748
        %v750 = vmul.f32 %v749, %v713
        %v751 = vsel %vm704, %v750, 0.0
        %v752 = vadd.f32 %v745, %v751
        %s753 = scalar_lea.vmem %s112, 24 [#allocation1]
        %754 = vst [vmem:[%s753] sm:$0xff] %v752
        %vm755 = vcmask 97368
        %s756 = scalar_lea.vmem %s112, 11 [#allocation1]
        %v757 = vld [vmem:[%s756] ss:$0 sm:$0xff]
        %s758 = scalar_lea.vmem %s104, 11 [#allocation0]
        %v759 = vld [vmem:[%s758] ss:$0 sm:$0xff]
        %v760 = vmul.f32 %v757, %v757
        %761 = vadd.xlane.f32.xlu0 %v760
        %v762 = vpop.xlane.xlu0 %761
        %v763 = vsub.f32 %v759, %v762
        %v764 = vrsqrt.pop %v763
        %s765 = scalar_lea.vmem %s104, 8 [#allocation0]
        %v766 = vld [vmem:[%s765] sm:$0xff]
        %s767 = scalar_lea.vmem %s112, 8 [#allocation1]
        %v768 = vld [vmem:[%s767] sm:$0xff]
        %v769 = vmul.f32 %v768, %v757
        %770 = vadd.xlane.f32.xlu0 %v769
        %v771 = vpop.xlane.xlu0 %770
        %v772 = vsub.f32 %v766, %v771
        %v773 = vmul.f32 %v772, %v764
        %vm774 = vcmask 1047555
        %vm775 = vmand %vm755, %vm774
        %v776 = vsel %vm775, %v773, 0.0
        %v777 = vadd.f32 %v768, %v776
        %s778 = scalar_lea.vmem %s112, 8 [#allocation1]
        %779 = vst [vmem:[%s778] sm:$0xff] %v777
        %s780 = scalar_lea.vmem %s104, 16 [#allocation0]
        %v781 = vld [vmem:[%s780] sm:$0xff]
        %s782 = scalar_lea.vmem %s112, 16 [#allocation1]
        %v783 = vld [vmem:[%s782] sm:$0xff]
        %v784 = vmul.f32 %v783, %v757
        %785 = vadd.xlane.f32.xlu0 %v784
        %v786 = vpop.xlane.xlu0 %785
        %v787 = vsub.f32 %v781, %v786
        %v788 = vmul.f32 %v787, %v764
        %v789 = vsel %vm755, %v788, 0.0
        %v790 = vadd.f32 %v783, %v789
        %s791 = scalar_lea.vmem %s112, 16 [#allocation1]
        %792 = vst [vmem:[%s791] sm:$0xff] %v790
        %s793 = scalar_lea.vmem %s104, 24 [#allocation0]
        %v794 = vld [vmem:[%s793] sm:$0xff]
        %s795 = scalar_lea.vmem %s112, 24 [#allocation1]
        %v796 = vld [vmem:[%s795] sm:$0xff]
        %v797 = vmul.f32 %v796, %v757
        %798 = vadd.xlane.f32.xlu0 %v797
        %v799 = vpop.xlane.xlu0 %798
        %v800 = vsub.f32 %v794, %v799
        %v801 = vmul.f32 %v800, %v764
        %v802 = vsel %vm755, %v801, 0.0
        %v803 = vadd.f32 %v796, %v802
        %s804 = scalar_lea.vmem %s112, 24 [#allocation1]
        %805 = vst [vmem:[%s804] sm:$0xff] %v803
        %vm806 = vcmask 105568
        %s807 = scalar_lea.vmem %s112, 12 [#allocation1]
        %v808 = vld [vmem:[%s807] ss:$0 sm:$0xff]
        %s809 = scalar_lea.vmem %s104, 12 [#allocation0]
        %v810 = vld [vmem:[%s809] ss:$0 sm:$0xff]
        %v811 = vmul.f32 %v808, %v808
        %812 = vadd.xlane.f32.xlu0 %v811
        %v813 = vpop.xlane.xlu0 %812
        %v814 = vsub.f32 %v810, %v813
        %v815 = vrsqrt.pop %v814
        %s816 = scalar_lea.vmem %s104, 8 [#allocation0]
        %v817 = vld [vmem:[%s816] sm:$0xff]
        %s818 = scalar_lea.vmem %s112, 8 [#allocation1]
        %v819 = vld [vmem:[%s818] sm:$0xff]
        %v820 = vmul.f32 %v819, %v808
        %821 = vadd.xlane.f32.xlu0 %v820
        %v822 = vpop.xlane.xlu0 %821
        %v823 = vsub.f32 %v817, %v822
        %v824 = vmul.f32 %v823, %v815
        %vm825 = vcmask 1047556
        %vm826 = vmand %vm806, %vm825
        %v827 = vsel %vm826, %v824, 0.0
        %v828 = vadd.f32 %v819, %v827
        %s829 = scalar_lea.vmem %s112, 8 [#allocation1]
        %830 = vst [vmem:[%s829] sm:$0xff] %v828
        %s831 = scalar_lea.vmem %s104, 16 [#allocation0]
        %v832 = vld [vmem:[%s831] sm:$0xff]
        %s833 = scalar_lea.vmem %s112, 16 [#allocation1]
        %v834 = vld [vmem:[%s833] sm:$0xff]
        %v835 = vmul.f32 %v834, %v808
        %836 = vadd.xlane.f32.xlu0 %v835
        %v837 = vpop.xlane.xlu0 %836
        %v838 = vsub.f32 %v832, %v837
        %v839 = vmul.f32 %v838, %v815
        %v840 = vsel %vm806, %v839, 0.0
        %v841 = vadd.f32 %v834, %v840
        %s842 = scalar_lea.vmem %s112, 16 [#allocation1]
        %843 = vst [vmem:[%s842] sm:$0xff] %v841
        %s844 = scalar_lea.vmem %s104, 24 [#allocation0]
        %v845 = vld [vmem:[%s844] sm:$0xff]
        %s846 = scalar_lea.vmem %s112, 24 [#allocation1]
        %v847 = vld [vmem:[%s846] sm:$0xff]
        %v848 = vmul.f32 %v847, %v808
        %849 = vadd.xlane.f32.xlu0 %v848
        %v850 = vpop.xlane.xlu0 %849
        %v851 = vsub.f32 %v845, %v850
        %v852 = vmul.f32 %v851, %v815
        %v853 = vsel %vm806, %v852, 0.0
        %v854 = vadd.f32 %v847, %v853
        %s855 = scalar_lea.vmem %s112, 24 [#allocation1]
        %856 = vst [vmem:[%s855] sm:$0xff] %v854
        %vm857 = vcmask 113768
        %s858 = scalar_lea.vmem %s112, 13 [#allocation1]
        %v859 = vld [vmem:[%s858] ss:$0 sm:$0xff]
        %s860 = scalar_lea.vmem %s104, 13 [#allocation0]
        %v861 = vld [vmem:[%s860] ss:$0 sm:$0xff]
        %v862 = vmul.f32 %v859, %v859
        %863 = vadd.xlane.f32.xlu0 %v862
        %v864 = vpop.xlane.xlu0 %863
        %v865 = vsub.f32 %v861, %v864
        %v866 = vrsqrt.pop %v865
        %s867 = scalar_lea.vmem %s104, 8 [#allocation0]
        %v868 = vld [vmem:[%s867] sm:$0xff]
        %s869 = scalar_lea.vmem %s112, 8 [#allocation1]
        %v870 = vld [vmem:[%s869] sm:$0xff]
        %v871 = vmul.f32 %v870, %v859
        %872 = vadd.xlane.f32.xlu0 %v871
        %v873 = vpop.xlane.xlu0 %872
        %v874 = vsub.f32 %v868, %v873
        %v875 = vmul.f32 %v874, %v866
        %vm876 = vcmask 1047557
        %vm877 = vmand %vm857, %vm876
        %v878 = vsel %vm877, %v875, 0.0
        %v879 = vadd.f32 %v870, %v878
        %s880 = scalar_lea.vmem %s112, 8 [#allocation1]
        %881 = vst [vmem:[%s880] sm:$0xff] %v879
        %s882 = scalar_lea.vmem %s104, 16 [#allocation0]
        %v883 = vld [vmem:[%s882] sm:$0xff]
        %s884 = scalar_lea.vmem %s112, 16 [#allocation1]
        %v885 = vld [vmem:[%s884] sm:$0xff]
        %v886 = vmul.f32 %v885, %v859
        %887 = vadd.xlane.f32.xlu0 %v886
        %v888 = vpop.xlane.xlu0 %887
        %v889 = vsub.f32 %v883, %v888
        %v890 = vmul.f32 %v889, %v866
        %v891 = vsel %vm857, %v890, 0.0
        %v892 = vadd.f32 %v885, %v891
        %s893 = scalar_lea.vmem %s112, 16 [#allocation1]
        %894 = vst [vmem:[%s893] sm:$0xff] %v892
        %s895 = scalar_lea.vmem %s104, 24 [#allocation0]
        %v896 = vld [vmem:[%s895] sm:$0xff]
        %s897 = scalar_lea.vmem %s112, 24 [#allocation1]
        %v898 = vld [vmem:[%s897] sm:$0xff]
        %v899 = vmul.f32 %v898, %v859
        %900 = vadd.xlane.f32.xlu0 %v899
        %v901 = vpop.xlane.xlu0 %900
        %v902 = vsub.f32 %v896, %v901
        %v903 = vmul.f32 %v902, %v866
        %v904 = vsel %vm857, %v903, 0.0
        %v905 = vadd.f32 %v898, %v904
        %s906 = scalar_lea.vmem %s112, 24 [#allocation1]
        %907 = vst [vmem:[%s906] sm:$0xff] %v905
        %vm908 = vcmask 121968
        %s909 = scalar_lea.vmem %s112, 14 [#allocation1]
        %v910 = vld [vmem:[%s909] ss:$0 sm:$0xff]
        %s911 = scalar_lea.vmem %s104, 14 [#allocation0]
        %v912 = vld [vmem:[%s911] ss:$0 sm:$0xff]
        %v913 = vmul.f32 %v910, %v910
        %914 = vadd.xlane.f32.xlu0 %v913
        %v915 = vpop.xlane.xlu0 %914
        %v916 = vsub.f32 %v912, %v915
        %v917 = vrsqrt.pop %v916
        %s918 = scalar_lea.vmem %s104, 8 [#allocation0]
        %v919 = vld [vmem:[%s918] sm:$0xff]
        %s920 = scalar_lea.vmem %s112, 8 [#allocation1]
        %v921 = vld [vmem:[%s920] sm:$0xff]
        %v922 = vmul.f32 %v921, %v910
        %923 = vadd.xlane.f32.xlu0 %v922
        %v924 = vpop.xlane.xlu0 %923
        %v925 = vsub.f32 %v919, %v924
        %v926 = vmul.f32 %v925, %v917
        %vm927 = vcmask 1047558
        %vm928 = vmand %vm908, %vm927
        %v929 = vsel %vm928, %v926, 0.0
        %v930 = vadd.f32 %v921, %v929
        %s931 = scalar_lea.vmem %s112, 8 [#allocation1]
        %932 = vst [vmem:[%s931] sm:$0xff] %v930
        %s933 = scalar_lea.vmem %s104, 16 [#allocation0]
        %v934 = vld [vmem:[%s933] sm:$0xff]
        %s935 = scalar_lea.vmem %s112, 16 [#allocation1]
        %v936 = vld [vmem:[%s935] sm:$0xff]
        %v937 = vmul.f32 %v936, %v910
        %938 = vadd.xlane.f32.xlu0 %v937
        %v939 = vpop.xlane.xlu0 %938
        %v940 = vsub.f32 %v934, %v939
        %v941 = vmul.f32 %v940, %v917
        %v942 = vsel %vm908, %v941, 0.0
        %v943 = vadd.f32 %v936, %v942
        %s944 = scalar_lea.vmem %s112, 16 [#allocation1]
        %945 = vst [vmem:[%s944] sm:$0xff] %v943
        %s946 = scalar_lea.vmem %s104, 24 [#allocation0]
        %v947 = vld [vmem:[%s946] sm:$0xff]
        %s948 = scalar_lea.vmem %s112, 24 [#allocation1]
        %v949 = vld [vmem:[%s948] sm:$0xff]
        %v950 = vmul.f32 %v949, %v910
        %951 = vadd.xlane.f32.xlu0 %v950
        %v952 = vpop.xlane.xlu0 %951
        %v953 = vsub.f32 %v947, %v952
        %v954 = vmul.f32 %v953, %v917
        %v955 = vsel %vm908, %v954, 0.0
        %v956 = vadd.f32 %v949, %v955
        %s957 = scalar_lea.vmem %s112, 24 [#allocation1]
        %958 = vst [vmem:[%s957] sm:$0xff] %v956
        %vm959 = vcmask 130168
        %s960 = scalar_lea.vmem %s112, 15 [#allocation1]
        %v961 = vld [vmem:[%s960] ss:$0 sm:$0xff]
        %s962 = scalar_lea.vmem %s104, 15 [#allocation0]
        %v963 = vld [vmem:[%s962] ss:$0 sm:$0xff]
        %v964 = vmul.f32 %v961, %v961
        %965 = vadd.xlane.f32.xlu0 %v964
        %v966 = vpop.xlane.xlu0 %965
        %v967 = vsub.f32 %v963, %v966
        %v968 = vrsqrt.pop %v967
        %s969 = scalar_lea.vmem %s104, 8 [#allocation0]
        %v970 = vld [vmem:[%s969] sm:$0xff]
        %s971 = scalar_lea.vmem %s112, 8 [#allocation1]
        %v972 = vld [vmem:[%s971] sm:$0xff]
        %v973 = vmul.f32 %v972, %v961
        %974 = vadd.xlane.f32.xlu0 %v973
        %v975 = vpop.xlane.xlu0 %974
        %v976 = vsub.f32 %v970, %v975
        %v977 = vmul.f32 %v976, %v968
        %vm978 = vcmask 1047559
        %vm979 = vmand %vm959, %vm978
        %v980 = vsel %vm979, %v977, 0.0
        %v981 = vadd.f32 %v972, %v980
        %s982 = scalar_lea.vmem %s112, 8 [#allocation1]
        %983 = vst [vmem:[%s982] sm:$0xff] %v981
        %s984 = scalar_lea.vmem %s104, 16 [#allocation0]
        %v985 = vld [vmem:[%s984] sm:$0xff]
        %s986 = scalar_lea.vmem %s112, 16 [#allocation1]
        %v987 = vld [vmem:[%s986] sm:$0xff]
        %v988 = vmul.f32 %v987, %v961
        %989 = vadd.xlane.f32.xlu0 %v988
        %v990 = vpop.xlane.xlu0 %989
        %v991 = vsub.f32 %v985, %v990
        %v992 = vmul.f32 %v991, %v968
        %v993 = vsel %vm959, %v992, 0.0
        %v994 = vadd.f32 %v987, %v993
        %s995 = scalar_lea.vmem %s112, 16 [#allocation1]
        %996 = vst [vmem:[%s995] sm:$0xff] %v994
        %s997 = scalar_lea.vmem %s104, 24 [#allocation0]
        %v998 = vld [vmem:[%s997] sm:$0xff]
        %s999 = scalar_lea.vmem %s112, 24 [#allocation1]
        %v1000 = vld [vmem:[%s999] sm:$0xff]
        %v1001 = vmul.f32 %v1000, %v961
        %1002 = vadd.xlane.f32.xlu0 %v1001
        %v1003 = vpop.xlane.xlu0 %1002
        %v1004 = vsub.f32 %v998, %v1003
        %v1005 = vmul.f32 %v1004, %v968
        %v1006 = vsel %vm959, %v1005, 0.0
        %v1007 = vadd.f32 %v1000, %v1006
        %s1008 = scalar_lea.vmem %s112, 24 [#allocation1]
        %1009 = vst [vmem:[%s1008] sm:$0xff] %v1007
        %vm1010 = vcmask 138368
        %s1011 = scalar_lea.vmem %s112, 16 [#allocation1]
        %v1012 = vld [vmem:[%s1011] ss:$0 sm:$0xff]
        %s1013 = scalar_lea.vmem %s104, 16 [#allocation0]
        %v1014 = vld [vmem:[%s1013] ss:$0 sm:$0xff]
        %v1015 = vmul.f32 %v1012, %v1012
        %1016 = vadd.xlane.f32.xlu0 %v1015
        %v1017 = vpop.xlane.xlu0 %1016
        %v1018 = vsub.f32 %v1014, %v1017
        %v1019 = vrsqrt.pop %v1018
        %s1020 = scalar_lea.vmem %s104, 16 [#allocation0]
        %v1021 = vld [vmem:[%s1020] sm:$0xff]
        %s1022 = scalar_lea.vmem %s112, 16 [#allocation1]
        %v1023 = vld [vmem:[%s1022] sm:$0xff]
        %v1024 = vmul.f32 %v1023, %v1012
        %1025 = vadd.xlane.f32.xlu0 %v1024
        %v1026 = vpop.xlane.xlu0 %1025
        %v1027 = vsub.f32 %v1021, %v1026
        %v1028 = vmul.f32 %v1027, %v1019
        %v1029 = vsel %vm1010, %v1028, 0.0
        %v1030 = vadd.f32 %v1023, %v1029
        %s1031 = scalar_lea.vmem %s112, 16 [#allocation1]
        %1032 = vst [vmem:[%s1031] sm:$0xff] %v1030
        %s1033 = scalar_lea.vmem %s104, 24 [#allocation0]
        %v1034 = vld [vmem:[%s1033] sm:$0xff]
        %s1035 = scalar_lea.vmem %s112, 24 [#allocation1]
        %v1036 = vld [vmem:[%s1035] sm:$0xff]
        %v1037 = vmul.f32 %v1036, %v1012
        %1038 = vadd.xlane.f32.xlu0 %v1037
        %v1039 = vpop.xlane.xlu0 %1038
        %v1040 = vsub.f32 %v1034, %v1039
        %v1041 = vmul.f32 %v1040, %v1019
        %v1042 = vsel %vm1010, %v1041, 0.0
        %v1043 = vadd.f32 %v1036, %v1042
        %s1044 = scalar_lea.vmem %s112, 24 [#allocation1]
        %1045 = vst [vmem:[%s1044] sm:$0xff] %v1043
        %vm1046 = vcmask 146568
        %s1047 = scalar_lea.vmem %s112, 17 [#allocation1]
        %v1048 = vld [vmem:[%s1047] ss:$0 sm:$0xff]
        %s1049 = scalar_lea.vmem %s104, 17 [#allocation0]
        %v1050 = vld [vmem:[%s1049] ss:$0 sm:$0xff]
        %v1051 = vmul.f32 %v1048, %v1048
        %1052 = vadd.xlane.f32.xlu0 %v1051
        %v1053 = vpop.xlane.xlu0 %1052
        %v1054 = vsub.f32 %v1050, %v1053
        %v1055 = vrsqrt.pop %v1054
        %s1056 = scalar_lea.vmem %s104, 16 [#allocation0]
        %v1057 = vld [vmem:[%s1056] sm:$0xff]
        %s1058 = scalar_lea.vmem %s112, 16 [#allocation1]
        %v1059 = vld [vmem:[%s1058] sm:$0xff]
        %v1060 = vmul.f32 %v1059, %v1048
        %1061 = vadd.xlane.f32.xlu0 %v1060
        %v1062 = vpop.xlane.xlu0 %1061
        %v1063 = vsub.f32 %v1057, %v1062
        %v1064 = vmul.f32 %v1063, %v1055
        %vm1065 = vcmask 1047553
        %vm1066 = vmand %vm1046, %vm1065
        %v1067 = vsel %vm1066, %v1064, 0.0
        %v1068 = vadd.f32 %v1059, %v1067
        %s1069 = scalar_lea.vmem %s112, 16 [#allocation1]
        %1070 = vst [vmem:[%s1069] sm:$0xff] %v1068
        %s1071 = scalar_lea.vmem %s104, 24 [#allocation0]
        %v1072 = vld [vmem:[%s1071] sm:$0xff]
        %s1073 = scalar_lea.vmem %s112, 24 [#allocation1]
        %v1074 = vld [vmem:[%s1073] sm:$0xff]
        %v1075 = vmul.f32 %v1074, %v1048
        %1076 = vadd.xlane.f32.xlu0 %v1075
        %v1077 = vpop.xlane.xlu0 %1076
        %v1078 = vsub.f32 %v1072, %v1077
        %v1079 = vmul.f32 %v1078, %v1055
        %v1080 = vsel %vm1046, %v1079, 0.0
        %v1081 = vadd.f32 %v1074, %v1080
        %s1082 = scalar_lea.vmem %s112, 24 [#allocation1]
        %1083 = vst [vmem:[%s1082] sm:$0xff] %v1081
        %vm1084 = vcmask 154768
        %s1085 = scalar_lea.vmem %s112, 18 [#allocation1]
        %v1086 = vld [vmem:[%s1085] ss:$0 sm:$0xff]
        %s1087 = scalar_lea.vmem %s104, 18 [#allocation0]
        %v1088 = vld [vmem:[%s1087] ss:$0 sm:$0xff]
        %v1089 = vmul.f32 %v1086, %v1086
        %1090 = vadd.xlane.f32.xlu0 %v1089
        %v1091 = vpop.xlane.xlu0 %1090
        %v1092 = vsub.f32 %v1088, %v1091
        %v1093 = vrsqrt.pop %v1092
        %s1094 = scalar_lea.vmem %s104, 16 [#allocation0]
        %v1095 = vld [vmem:[%s1094] sm:$0xff]
        %s1096 = scalar_lea.vmem %s112, 16 [#allocation1]
        %v1097 = vld [vmem:[%s1096] sm:$0xff]
        %v1098 = vmul.f32 %v1097, %v1086
        %1099 = vadd.xlane.f32.xlu0 %v1098
        %v1100 = vpop.xlane.xlu0 %1099
        %v1101 = vsub.f32 %v1095, %v1100
        %v1102 = vmul.f32 %v1101, %v1093
        %vm1103 = vcmask 1047554
        %vm1104 = vmand %vm1084, %vm1103
        %v1105 = vsel %vm1104, %v1102, 0.0
        %v1106 = vadd.f32 %v1097, %v1105
        %s1107 = scalar_lea.vmem %s112, 16 [#allocation1]
        %1108 = vst [vmem:[%s1107] sm:$0xff] %v1106
        %s1109 = scalar_lea.vmem %s104, 24 [#allocation0]
        %v1110 = vld [vmem:[%s1109] sm:$0xff]
        %s1111 = scalar_lea.vmem %s112, 24 [#allocation1]
        %v1112 = vld [vmem:[%s1111] sm:$0xff]
        %v1113 = vmul.f32 %v1112, %v1086
        %1114 = vadd.xlane.f32.xlu0 %v1113
        %v1115 = vpop.xlane.xlu0 %1114
        %v1116 = vsub.f32 %v1110, %v1115
        %v1117 = vmul.f32 %v1116, %v1093
        %v1118 = vsel %vm1084, %v1117, 0.0
        %v1119 = vadd.f32 %v1112, %v1118
        %s1120 = scalar_lea.vmem %s112, 24 [#allocation1]
        %1121 = vst [vmem:[%s1120] sm:$0xff] %v1119
        %vm1122 = vcmask 162968
        %s1123 = scalar_lea.vmem %s112, 19 [#allocation1]
        %v1124 = vld [vmem:[%s1123] ss:$0 sm:$0xff]
        %s1125 = scalar_lea.vmem %s104, 19 [#allocation0]
        %v1126 = vld [vmem:[%s1125] ss:$0 sm:$0xff]
        %v1127 = vmul.f32 %v1124, %v1124
        %1128 = vadd.xlane.f32.xlu0 %v1127
        %v1129 = vpop.xlane.xlu0 %1128
        %v1130 = vsub.f32 %v1126, %v1129
        %v1131 = vrsqrt.pop %v1130
        %s1132 = scalar_lea.vmem %s104, 16 [#allocation0]
        %v1133 = vld [vmem:[%s1132] sm:$0xff]
        %s1134 = scalar_lea.vmem %s112, 16 [#allocation1]
        %v1135 = vld [vmem:[%s1134] sm:$0xff]
        %v1136 = vmul.f32 %v1135, %v1124
        %1137 = vadd.xlane.f32.xlu0 %v1136
        %v1138 = vpop.xlane.xlu0 %1137
        %v1139 = vsub.f32 %v1133, %v1138
        %v1140 = vmul.f32 %v1139, %v1131
        %vm1141 = vcmask 1047555
        %vm1142 = vmand %vm1122, %vm1141
        %v1143 = vsel %vm1142, %v1140, 0.0
        %v1144 = vadd.f32 %v1135, %v1143
        %s1145 = scalar_lea.vmem %s112, 16 [#allocation1]
        %1146 = vst [vmem:[%s1145] sm:$0xff] %v1144
        %s1147 = scalar_lea.vmem %s104, 24 [#allocation0]
        %v1148 = vld [vmem:[%s1147] sm:$0xff]
        %s1149 = scalar_lea.vmem %s112, 24 [#allocation1]
        %v1150 = vld [vmem:[%s1149] sm:$0xff]
        %v1151 = vmul.f32 %v1150, %v1124
        %1152 = vadd.xlane.f32.xlu0 %v1151
        %v1153 = vpop.xlane.xlu0 %1152
        %v1154 = vsub.f32 %v1148, %v1153
        %v1155 = vmul.f32 %v1154, %v1131
        %v1156 = vsel %vm1122, %v1155, 0.0
        %v1157 = vadd.f32 %v1150, %v1156
        %s1158 = scalar_lea.vmem %s112, 24 [#allocation1]
        %1159 = vst [vmem:[%s1158] sm:$0xff] %v1157
        %vm1160 = vcmask 171168
        %s1161 = scalar_lea.vmem %s112, 20 [#allocation1]
        %v1162 = vld [vmem:[%s1161] ss:$0 sm:$0xff]
        %s1163 = scalar_lea.vmem %s104, 20 [#allocation0]
        %v1164 = vld [vmem:[%s1163] ss:$0 sm:$0xff]
        %v1165 = vmul.f32 %v1162, %v1162
        %1166 = vadd.xlane.f32.xlu0 %v1165
        %v1167 = vpop.xlane.xlu0 %1166
        %v1168 = vsub.f32 %v1164, %v1167
        %v1169 = vrsqrt.pop %v1168
        %s1170 = scalar_lea.vmem %s104, 16 [#allocation0]
        %v1171 = vld [vmem:[%s1170] sm:$0xff]
        %s1172 = scalar_lea.vmem %s112, 16 [#allocation1]
        %v1173 = vld [vmem:[%s1172] sm:$0xff]
        %v1174 = vmul.f32 %v1173, %v1162
        %1175 = vadd.xlane.f32.xlu0 %v1174
        %v1176 = vpop.xlane.xlu0 %1175
        %v1177 = vsub.f32 %v1171, %v1176
        %v1178 = vmul.f32 %v1177, %v1169
        %vm1179 = vcmask 1047556
        %vm1180 = vmand %vm1160, %vm1179
        %v1181 = vsel %vm1180, %v1178, 0.0
        %v1182 = vadd.f32 %v1173, %v1181
        %s1183 = scalar_lea.vmem %s112, 16 [#allocation1]
        %1184 = vst [vmem:[%s1183] sm:$0xff] %v1182
        %s1185 = scalar_lea.vmem %s104, 24 [#allocation0]
        %v1186 = vld [vmem:[%s1185] sm:$0xff]
        %s1187 = scalar_lea.vmem %s112, 24 [#allocation1]
        %v1188 = vld [vmem:[%s1187] sm:$0xff]
        %v1189 = vmul.f32 %v1188, %v1162
        %1190 = vadd.xlane.f32.xlu0 %v1189
        %v1191 = vpop.xlane.xlu0 %1190
        %v1192 = vsub.f32 %v1186, %v1191
        %v1193 = vmul.f32 %v1192, %v1169
        %v1194 = vsel %vm1160, %v1193, 0.0
        %v1195 = vadd.f32 %v1188, %v1194
        %s1196 = scalar_lea.vmem %s112, 24 [#allocation1]
        %1197 = vst [vmem:[%s1196] sm:$0xff] %v1195
        %vm1198 = vcmask 179368
        %s1199 = scalar_lea.vmem %s112, 21 [#allocation1]
        %v1200 = vld [vmem:[%s1199] ss:$0 sm:$0xff]
        %s1201 = scalar_lea.vmem %s104, 21 [#allocation0]
        %v1202 = vld [vmem:[%s1201] ss:$0 sm:$0xff]
        %v1203 = vmul.f32 %v1200, %v1200
        %1204 = vadd.xlane.f32.xlu0 %v1203
        %v1205 = vpop.xlane.xlu0 %1204
        %v1206 = vsub.f32 %v1202, %v1205
        %v1207 = vrsqrt.pop %v1206
        %s1208 = scalar_lea.vmem %s104, 16 [#allocation0]
        %v1209 = vld [vmem:[%s1208] sm:$0xff]
        %s1210 = scalar_lea.vmem %s112, 16 [#allocation1]
        %v1211 = vld [vmem:[%s1210] sm:$0xff]
        %v1212 = vmul.f32 %v1211, %v1200
        %1213 = vadd.xlane.f32.xlu0 %v1212
        %v1214 = vpop.xlane.xlu0 %1213
        %v1215 = vsub.f32 %v1209, %v1214
        %v1216 = vmul.f32 %v1215, %v1207
        %vm1217 = vcmask 1047557
        %vm1218 = vmand %vm1198, %vm1217
        %v1219 = vsel %vm1218, %v1216, 0.0
        %v1220 = vadd.f32 %v1211, %v1219
        %s1221 = scalar_lea.vmem %s112, 16 [#allocation1]
        %1222 = vst [vmem:[%s1221] sm:$0xff] %v1220
        %s1223 = scalar_lea.vmem %s104, 24 [#allocation0]
        %v1224 = vld [vmem:[%s1223] sm:$0xff]
        %s1225 = scalar_lea.vmem %s112, 24 [#allocation1]
        %v1226 = vld [vmem:[%s1225] sm:$0xff]
        %v1227 = vmul.f32 %v1226, %v1200
        %1228 = vadd.xlane.f32.xlu0 %v1227
        %v1229 = vpop.xlane.xlu0 %1228
        %v1230 = vsub.f32 %v1224, %v1229
        %v1231 = vmul.f32 %v1230, %v1207
        %v1232 = vsel %vm1198, %v1231, 0.0
        %v1233 = vadd.f32 %v1226, %v1232
        %s1234 = scalar_lea.vmem %s112, 24 [#allocation1]
        %1235 = vst [vmem:[%s1234] sm:$0xff] %v1233
        %vm1236 = vcmask 187568
        %s1237 = scalar_lea.vmem %s112, 22 [#allocation1]
        %v1238 = vld [vmem:[%s1237] ss:$0 sm:$0xff]
        %s1239 = scalar_lea.vmem %s104, 22 [#allocation0]
        %v1240 = vld [vmem:[%s1239] ss:$0 sm:$0xff]
        %v1241 = vmul.f32 %v1238, %v1238
        %1242 = vadd.xlane.f32.xlu0 %v1241
        %v1243 = vpop.xlane.xlu0 %1242
        %v1244 = vsub.f32 %v1240, %v1243
        %v1245 = vrsqrt.pop %v1244
        %s1246 = scalar_lea.vmem %s104, 16 [#allocation0]
        %v1247 = vld [vmem:[%s1246] sm:$0xff]
        %s1248 = scalar_lea.vmem %s112, 16 [#allocation1]
        %v1249 = vld [vmem:[%s1248] sm:$0xff]
        %v1250 = vmul.f32 %v1249, %v1238
        %1251 = vadd.xlane.f32.xlu0 %v1250
        %v1252 = vpop.xlane.xlu0 %1251
        %v1253 = vsub.f32 %v1247, %v1252
        %v1254 = vmul.f32 %v1253, %v1245
        %vm1255 = vcmask 1047558
        %vm1256 = vmand %vm1236, %vm1255
        %v1257 = vsel %vm1256, %v1254, 0.0
        %v1258 = vadd.f32 %v1249, %v1257
        %s1259 = scalar_lea.vmem %s112, 16 [#allocation1]
        %1260 = vst [vmem:[%s1259] sm:$0xff] %v1258
        %s1261 = scalar_lea.vmem %s104, 24 [#allocation0]
        %v1262 = vld [vmem:[%s1261] sm:$0xff]
        %s1263 = scalar_lea.vmem %s112, 24 [#allocation1]
        %v1264 = vld [vmem:[%s1263] sm:$0xff]
        %v1265 = vmul.f32 %v1264, %v1238
        %1266 = vadd.xlane.f32.xlu0 %v1265
        %v1267 = vpop.xlane.xlu0 %1266
        %v1268 = vsub.f32 %v1262, %v1267
        %v1269 = vmul.f32 %v1268, %v1245
        %v1270 = vsel %vm1236, %v1269, 0.0
        %v1271 = vadd.f32 %v1264, %v1270
        %s1272 = scalar_lea.vmem %s112, 24 [#allocation1]
        %1273 = vst [vmem:[%s1272] sm:$0xff] %v1271
        %vm1274 = vcmask 195768
        %s1275 = scalar_lea.vmem %s112, 23 [#allocation1]
        %v1276 = vld [vmem:[%s1275] ss:$0 sm:$0xff]
        %s1277 = scalar_lea.vmem %s104, 23 [#allocation0]
        %v1278 = vld [vmem:[%s1277] ss:$0 sm:$0xff]
        %v1279 = vmul.f32 %v1276, %v1276
        %1280 = vadd.xlane.f32.xlu0 %v1279
        %v1281 = vpop.xlane.xlu0 %1280
        %v1282 = vsub.f32 %v1278, %v1281
        %v1283 = vrsqrt.pop %v1282
        %s1284 = scalar_lea.vmem %s104, 16 [#allocation0]
        %v1285 = vld [vmem:[%s1284] sm:$0xff]
        %s1286 = scalar_lea.vmem %s112, 16 [#allocation1]
        %v1287 = vld [vmem:[%s1286] sm:$0xff]
        %v1288 = vmul.f32 %v1287, %v1276
        %1289 = vadd.xlane.f32.xlu0 %v1288
        %v1290 = vpop.xlane.xlu0 %1289
        %v1291 = vsub.f32 %v1285, %v1290
        %v1292 = vmul.f32 %v1291, %v1283
        %vm1293 = vcmask 1047559
        %vm1294 = vmand %vm1274, %vm1293
        %v1295 = vsel %vm1294, %v1292, 0.0
        %v1296 = vadd.f32 %v1287, %v1295
        %s1297 = scalar_lea.vmem %s112, 16 [#allocation1]
        %1298 = vst [vmem:[%s1297] sm:$0xff] %v1296
        %s1299 = scalar_lea.vmem %s104, 24 [#allocation0]
        %v1300 = vld [vmem:[%s1299] sm:$0xff]
        %s1301 = scalar_lea.vmem %s112, 24 [#allocation1]
        %v1302 = vld [vmem:[%s1301] sm:$0xff]
        %v1303 = vmul.f32 %v1302, %v1276
        %1304 = vadd.xlane.f32.xlu0 %v1303
        %v1305 = vpop.xlane.xlu0 %1304
        %v1306 = vsub.f32 %v1300, %v1305
        %v1307 = vmul.f32 %v1306, %v1283
        %v1308 = vsel %vm1274, %v1307, 0.0
        %v1309 = vadd.f32 %v1302, %v1308
        %s1310 = scalar_lea.vmem %s112, 24 [#allocation1]
        %1311 = vst [vmem:[%s1310] sm:$0xff] %v1309
        %vm1312 = vcmask 203968
        %s1313 = scalar_lea.vmem %s112, 24 [#allocation1]
        %v1314 = vld [vmem:[%s1313] ss:$0 sm:$0xff]
        %s1315 = scalar_lea.vmem %s104, 24 [#allocation0]
        %v1316 = vld [vmem:[%s1315] ss:$0 sm:$0xff]
        %v1317 = vmul.f32 %v1314, %v1314
        %1318 = vadd.xlane.f32.xlu0 %v1317
        %v1319 = vpop.xlane.xlu0 %1318
        %v1320 = vsub.f32 %v1316, %v1319
        %v1321 = vrsqrt.pop %v1320
        %s1322 = scalar_lea.vmem %s104, 24 [#allocation0]
        %v1323 = vld [vmem:[%s1322] sm:$0xff]
        %s1324 = scalar_lea.vmem %s112, 24 [#allocation1]
        %v1325 = vld [vmem:[%s1324] sm:$0xff]
        %v1326 = vmul.f32 %v1325, %v1314
        %1327 = vadd.xlane.f32.xlu0 %v1326
        %v1328 = vpop.xlane.xlu0 %1327
        %v1329 = vsub.f32 %v1323, %v1328
        %v1330 = vmul.f32 %v1329, %v1321
        %v1331 = vsel %vm1312, %v1330, 0.0
        %v1332 = vadd.f32 %v1325, %v1331
        %s1333 = scalar_lea.vmem %s112, 24 [#allocation1]
        %1334 = vst [vmem:[%s1333] sm:$0xff] %v1332
        %vm1335 = vcmask 212168
        %s1336 = scalar_lea.vmem %s112, 25 [#allocation1]
        %v1337 = vld [vmem:[%s1336] ss:$0 sm:$0xff]
        %s1338 = scalar_lea.vmem %s104, 25 [#allocation0]
        %v1339 = vld [vmem:[%s1338] ss:$0 sm:$0xff]
        %v1340 = vmul.f32 %v1337, %v1337
        %1341 = vadd.xlane.f32.xlu0 %v1340
        %v1342 = vpop.xlane.xlu0 %1341
        %v1343 = vsub.f32 %v1339, %v1342
        %v1344 = vrsqrt.pop %v1343
        %s1345 = scalar_lea.vmem %s104, 24 [#allocation0]
        %v1346 = vld [vmem:[%s1345] sm:$0xff]
        %s1347 = scalar_lea.vmem %s112, 24 [#allocation1]
        %v1348 = vld [vmem:[%s1347] sm:$0xff]
        %v1349 = vmul.f32 %v1348, %v1337
        %1350 = vadd.xlane.f32.xlu0 %v1349
        %v1351 = vpop.xlane.xlu0 %1350
        %v1352 = vsub.f32 %v1346, %v1351
        %v1353 = vmul.f32 %v1352, %v1344
        %vm1354 = vcmask 1047553
        %vm1355 = vmand %vm1335, %vm1354
        %v1356 = vsel %vm1355, %v1353, 0.0
        %v1357 = vadd.f32 %v1348, %v1356
        %s1358 = scalar_lea.vmem %s112, 24 [#allocation1]
        %1359 = vst [vmem:[%s1358] sm:$0xff] %v1357
        %vm1360 = vcmask 220368
        %s1361 = scalar_lea.vmem %s112, 26 [#allocation1]
        %v1362 = vld [vmem:[%s1361] ss:$0 sm:$0xff]
        %s1363 = scalar_lea.vmem %s104, 26 [#allocation0]
        %v1364 = vld [vmem:[%s1363] ss:$0 sm:$0xff]
        %v1365 = vmul.f32 %v1362, %v1362
        %1366 = vadd.xlane.f32.xlu0 %v1365
        %v1367 = vpop.xlane.xlu0 %1366
        %v1368 = vsub.f32 %v1364, %v1367
        %v1369 = vrsqrt.pop %v1368
        %s1370 = scalar_lea.vmem %s104, 24 [#allocation0]
        %v1371 = vld [vmem:[%s1370] sm:$0xff]
        %s1372 = scalar_lea.vmem %s112, 24 [#allocation1]
        %v1373 = vld [vmem:[%s1372] sm:$0xff]
        %v1374 = vmul.f32 %v1373, %v1362
        %1375 = vadd.xlane.f32.xlu0 %v1374
        %v1376 = vpop.xlane.xlu0 %1375
        %v1377 = vsub.f32 %v1371, %v1376
        %v1378 = vmul.f32 %v1377, %v1369
        %vm1379 = vcmask 1047554
        %vm1380 = vmand %vm1360, %vm1379
        %v1381 = vsel %vm1380, %v1378, 0.0
        %v1382 = vadd.f32 %v1373, %v1381
        %s1383 = scalar_lea.vmem %s112, 24 [#allocation1]
        %1384 = vst [vmem:[%s1383] sm:$0xff] %v1382
        %vm1385 = vcmask 228568
        %s1386 = scalar_lea.vmem %s112, 27 [#allocation1]
        %v1387 = vld [vmem:[%s1386] ss:$0 sm:$0xff]
        %s1388 = scalar_lea.vmem %s104, 27 [#allocation0]
        %v1389 = vld [vmem:[%s1388] ss:$0 sm:$0xff]
        %v1390 = vmul.f32 %v1387, %v1387
        %1391 = vadd.xlane.f32.xlu0 %v1390
        %v1392 = vpop.xlane.xlu0 %1391
        %v1393 = vsub.f32 %v1389, %v1392
        %v1394 = vrsqrt.pop %v1393
        %s1395 = scalar_lea.vmem %s104, 24 [#allocation0]
        %v1396 = vld [vmem:[%s1395] sm:$0xff]
        %s1397 = scalar_lea.vmem %s112, 24 [#allocation1]
        %v1398 = vld [vmem:[%s1397] sm:$0xff]
        %v1399 = vmul.f32 %v1398, %v1387
        %1400 = vadd.xlane.f32.xlu0 %v1399
        %v1401 = vpop.xlane.xlu0 %1400
        %v1402 = vsub.f32 %v1396, %v1401
        %v1403 = vmul.f32 %v1402, %v1394
        %vm1404 = vcmask 1047555
        %vm1405 = vmand %vm1385, %vm1404
        %v1406 = vsel %vm1405, %v1403, 0.0
        %v1407 = vadd.f32 %v1398, %v1406
        %s1408 = scalar_lea.vmem %s112, 24 [#allocation1]
        %1409 = vst [vmem:[%s1408] sm:$0xff] %v1407
        %vm1410 = vcmask 236768
        %s1411 = scalar_lea.vmem %s112, 28 [#allocation1]
        %v1412 = vld [vmem:[%s1411] ss:$0 sm:$0xff]
        %s1413 = scalar_lea.vmem %s104, 28 [#allocation0]
        %v1414 = vld [vmem:[%s1413] ss:$0 sm:$0xff]
        %v1415 = vmul.f32 %v1412, %v1412
        %1416 = vadd.xlane.f32.xlu0 %v1415
        %v1417 = vpop.xlane.xlu0 %1416
        %v1418 = vsub.f32 %v1414, %v1417
        %v1419 = vrsqrt.pop %v1418
        %s1420 = scalar_lea.vmem %s104, 24 [#allocation0]
        %v1421 = vld [vmem:[%s1420] sm:$0xff]
        %s1422 = scalar_lea.vmem %s112, 24 [#allocation1]
        %v1423 = vld [vmem:[%s1422] sm:$0xff]
        %v1424 = vmul.f32 %v1423, %v1412
        %1425 = vadd.xlane.f32.xlu0 %v1424
        %v1426 = vpop.xlane.xlu0 %1425
        %v1427 = vsub.f32 %v1421, %v1426
        %v1428 = vmul.f32 %v1427, %v1419
        %vm1429 = vcmask 1047556
        %vm1430 = vmand %vm1410, %vm1429
        %v1431 = vsel %vm1430, %v1428, 0.0
        %v1432 = vadd.f32 %v1423, %v1431
        %s1433 = scalar_lea.vmem %s112, 24 [#allocation1]
        %1434 = vst [vmem:[%s1433] sm:$0xff] %v1432
        %vm1435 = vcmask 244968
        %s1436 = scalar_lea.vmem %s112, 29 [#allocation1]
        %v1437 = vld [vmem:[%s1436] ss:$0 sm:$0xff]
        %s1438 = scalar_lea.vmem %s104, 29 [#allocation0]
        %v1439 = vld [vmem:[%s1438] ss:$0 sm:$0xff]
        %v1440 = vmul.f32 %v1437, %v1437
        %1441 = vadd.xlane.f32.xlu0 %v1440
        %v1442 = vpop.xlane.xlu0 %1441
        %v1443 = vsub.f32 %v1439, %v1442
        %v1444 = vrsqrt.pop %v1443
        %s1445 = scalar_lea.vmem %s104, 24 [#allocation0]
        %v1446 = vld [vmem:[%s1445] sm:$0xff]
        %s1447 = scalar_lea.vmem %s112, 24 [#allocation1]
        %v1448 = vld [vmem:[%s1447] sm:$0xff]
        %v1449 = vmul.f32 %v1448, %v1437
        %1450 = vadd.xlane.f32.xlu0 %v1449
        %v1451 = vpop.xlane.xlu0 %1450
        %v1452 = vsub.f32 %v1446, %v1451
        %v1453 = vmul.f32 %v1452, %v1444
        %vm1454 = vcmask 1047557
        %vm1455 = vmand %vm1435, %vm1454
        %v1456 = vsel %vm1455, %v1453, 0.0
        %v1457 = vadd.f32 %v1448, %v1456
        %s1458 = scalar_lea.vmem %s112, 24 [#allocation1]
        %1459 = vst [vmem:[%s1458] sm:$0xff] %v1457
        %vm1460 = vcmask 253168
        %s1461 = scalar_lea.vmem %s112, 30 [#allocation1]
        %v1462 = vld [vmem:[%s1461] ss:$0 sm:$0xff]
        %s1463 = scalar_lea.vmem %s104, 30 [#allocation0]
        %v1464 = vld [vmem:[%s1463] ss:$0 sm:$0xff]
        %v1465 = vmul.f32 %v1462, %v1462
        %1466 = vadd.xlane.f32.xlu0 %v1465
        %v1467 = vpop.xlane.xlu0 %1466
        %v1468 = vsub.f32 %v1464, %v1467
        %v1469 = vrsqrt.pop %v1468
        %s1470 = scalar_lea.vmem %s104, 24 [#allocation0]
        %v1471 = vld [vmem:[%s1470] sm:$0xff]
        %s1472 = scalar_lea.vmem %s112, 24 [#allocation1]
        %v1473 = vld [vmem:[%s1472] sm:$0xff]
        %v1474 = vmul.f32 %v1473, %v1462
        %1475 = vadd.xlane.f32.xlu0 %v1474
        %v1476 = vpop.xlane.xlu0 %1475
        %v1477 = vsub.f32 %v1471, %v1476
        %v1478 = vmul.f32 %v1477, %v1469
        %vm1479 = vcmask 1047558
        %vm1480 = vmand %vm1460, %vm1479
        %v1481 = vsel %vm1480, %v1478, 0.0
        %v1482 = vadd.f32 %v1473, %v1481
        %s1483 = scalar_lea.vmem %s112, 24 [#allocation1]
        %1484 = vst [vmem:[%s1483] sm:$0xff] %v1482
        %vm1485 = vcmask 261368
        %s1486 = scalar_lea.vmem %s112, 31 [#allocation1]
        %v1487 = vld [vmem:[%s1486] ss:$0 sm:$0xff]
        %s1488 = scalar_lea.vmem %s104, 31 [#allocation0]
        %v1489 = vld [vmem:[%s1488] ss:$0 sm:$0xff]
        %v1490 = vmul.f32 %v1487, %v1487
        %1491 = vadd.xlane.f32.xlu0 %v1490
        %v1492 = vpop.xlane.xlu0 %1491
        %v1493 = vsub.f32 %v1489, %v1492
        %v1494 = vrsqrt.pop %v1493
        %s1495 = scalar_lea.vmem %s104, 24 [#allocation0]
        %v1496 = vld [vmem:[%s1495] sm:$0xff]
        %s1497 = scalar_lea.vmem %s112, 24 [#allocation1]
        %v1498 = vld [vmem:[%s1497] sm:$0xff]
        %v1499 = vmul.f32 %v1498, %v1487
        %1500 = vadd.xlane.f32.xlu0 %v1499
        %v1501 = vpop.xlane.xlu0 %1500
        %v1502 = vsub.f32 %v1496, %v1501
        %v1503 = vmul.f32 %v1502, %v1494
        %vm1504 = vcmask 1047559
        %vm1505 = vmand %vm1485, %vm1504
        %v1506 = vsel %vm1505, %v1503, 0.0
        %v1507 = vadd.f32 %v1498, %v1506
        %s1508 = scalar_lea.vmem %s112, 24 [#allocation1]
        %1509 = vst [vmem:[%s1508] sm:$0xff] %v1507
        %s1510 = sand.u32 %s8, 1
        %s1511 = sand.u32 %s8, 1
        %s1512 = smul.addr %s1511, 32
        %s1513 = scalar_lea.vmem [#allocation1], %s1512
        %s1514 = sadd.s32 %s15, %s14
        %s1515 = smul.addr %s13, 4
        %s1516 = sadd.s32 %s1514, %s1515
        %s1517 = smul.addr %s1516, 8
        %s1518 = scalar_lea.vmem %s1, %s1517
        // Predicated region
        $region55: #{custom-call.2} parent=53 // pred_check
          _
        $region56: #{custom-call.2} parent=53 // pred_check_branch
          %1520 = sbr.rel (0) target = $region58
        $region57: #{custom-call.2} parent=53 // pred_region
          // Predicated region
          $region59: #{custom-call.2} parent=57 // pred_check
            _
          $region60: #{custom-call.2} parent=57 // pred_check_branch
            %1522 = sbr.rel (0) target = $region62
          $region61: #{custom-call.2} parent=57 // pred_region
            // Predicated region
            $region74: #{custom-call.2} parent=61 // pred_check
              _
            $region75: #{custom-call.2} parent=61 // pred_check_branch
              %1543 = sbr.rel (0) target = $region77
            $region76: #{custom-call.2} parent=61 // pred_region
              loop: start=0, step=1, limit=1
              $region78: #{custom-call.2} parent=76 // loop_pre_header
                _
              $region79: #{custom-call.2} parent=76 // loop_header
                %s1545 = sphi 0, %s1549
                %p1546 = scmp.ge.s32.totalorder %s1545, 1
                %s1550 = sphi %s1513, %s1513
                %s1551 = sphi %s1518, %s1518
              $region80: #{custom-call.2} parent=76 // loop_header_branch
                %1548 = sbr.rel (%p1546) target = $region84
              $region81: #{custom-call.2} parent=76 // loop_body
                %v1552 = vld [vmem:[%s1550] sm:$0xff]
                %1553 = vst [vmem:[%s1551] sm:$0xff] %v1552
                %v1554 = vld [vmem:[%s1550 + $0x8] sm:$0xff]
                %1555 = vst [vmem:[%s1551 + $0x8] sm:$0xff] %v1554
                %v1556 = vld [vmem:[%s1550 + $0x10] sm:$0xff]
                %1557 = vst [vmem:[%s1551 + $0x10] sm:$0xff] %v1556
                %v1558 = vld [vmem:[%s1550 + $0x18] sm:$0xff]
                %1559 = vst [vmem:[%s1551 + $0x18] sm:$0xff] %v1558
              $region82: #{custom-call.2} parent=76 // loop_footer
                %s1549 = sadd.s32 1, %s1545
              $region83: #{custom-call.2} parent=76 // loop_footer_branch
                %1544 = sbr.rel target = $region79
              $region84: #{custom-call.2} parent=76 // loop_exit
                _
            $region77: #{custom-call.2} parent=61 // pred_fallthru
              _
            // Predicated region
            $region85: #{custom-call.2} parent=61 // pred_check
              _
            $region86: #{custom-call.2} parent=61 // pred_check_branch
              %1561 = sbr.rel target = $region88
            $region87: #{custom-call.2} parent=61 // pred_region
              _
            $region88: #{custom-call.2} parent=61 // pred_fallthru
              _
          $region62: #{custom-call.2} parent=57 // pred_fallthru
            _
          // Predicated region
          $region63: #{custom-call.2} parent=57 // pred_check
            _
          $region64: #{custom-call.2} parent=57 // pred_check_branch
            %1524 = sbr.rel target = $region66
          $region65: #{custom-call.2} parent=57 // pred_region
            loop: start=0, step=1, limit=1
            $region67: #{custom-call.2} parent=65 // loop_pre_header
              _
            $region68: #{custom-call.2} parent=65 // loop_header
              %s1527 = sphi 0, %s1531
              %p1528 = scmp.ge.s32.totalorder %s1527, 1
              %s1532 = sphi %s1513, %s1513
              %s1533 = sphi %s1518, %s1518
            $region69: #{custom-call.2} parent=65 // loop_header_branch
              %1530 = sbr.rel (%p1528) target = $region73
            $region70: #{custom-call.2} parent=65 // loop_body
              %v1534 = vld [vmem:[%s1532] sm:$0xff]
              %1535 = vst [vmem:[%s1533] sm:$0xff] %v1534
              %v1536 = vld [vmem:[%s1532 + $0x8] sm:$0xff]
              %1537 = vst [vmem:[%s1533 + $0x8] sm:$0xff] %v1536
              %v1538 = vld [vmem:[%s1532 + $0x10] sm:$0xff]
              %1539 = vst [vmem:[%s1533 + $0x10] sm:$0xff] %v1538
              %v1540 = vld [vmem:[%s1532 + $0x18] sm:$0xff]
              %1541 = vst [vmem:[%s1533 + $0x18] sm:$0xff] %v1540
            $region71: #{custom-call.2} parent=65 // loop_footer
              %s1531 = sadd.s32 1, %s1527
            $region72: #{custom-call.2} parent=65 // loop_footer_branch
              %1526 = sbr.rel target = $region68
            $region73: #{custom-call.2} parent=65 // loop_exit
              _
          $region66: #{custom-call.2} parent=57 // pred_fallthru
            _
        $region58: #{custom-call.2} parent=53 // pred_fallthru
          _
        %1562 = vnop
      $region54: #{custom-call.2} parent=5 // pred_fallthru
        _
      %p1563 = scmp.le.s32.totalorder 2, %s3
      // Predicated region
      $region89: #{custom-call.2} parent=5 // pred_check
        %p1564 = pneg %p1563
      $region90: #{custom-call.2} parent=5 // pred_check_branch
        %1566 = sbr.rel (%p1564) target = $region92
      $region91: #{custom-call.2} parent=5 // pred_region
        %s1567 = ssub.s32 %s3, 2
        %s1568 = sand.u32 %s9, 1
        %s1569 = sand.u32 %s9, 1
        %s1570 = smul.addr %s1569, 32
        %s1571 = scalar_lea.vmem [#allocation1], %s1570
      $region92: #{custom-call.2} parent=5 // pred_fallthru
        _
    $region6: #{custom-call.2} parent=1 // loop_footer
      %s7 = sadd.s32 1, %s3
    $region7: #{custom-call.2} parent=1 // loop_footer_branch
      %2 = sbr.rel target = $region3
    $region8: #{custom-call.2} parent=1 // loop_exit
      _

// kernel: neg.9
$region0: #{neg.9}
  #allocation0 [shape = 's32[1]{0}', space=sflag, size = 0x4, scoped, tag = 'scoped memory for neg.9']
  %s0 = inlined_call_operand.vmem [shape: f32[4,32], index: 0, kind: input, shape index: {}]
  %s1 = inlined_call_operand.vmem [shape: f32[4,32], index: 1, kind: output, shape index: {}]
  %v2 = vld [vmem:[%s0] sm:$0xf]
  %3 = xla_tuple %v2
  %4 = xla_tuple %3
  %v5 = vxor.u32 %v2, 2147483648
  %6 = xla_tuple %v5
  %7 = vst [vmem:[%s1] sm:$0xf] %v5

// kernel: grood_forward.1
$region0: #{grood_forward.1}
  #allocation0 [shape = 'u32[]', space=smem, size = 0x4, offset = 0x4, fixed_abs, tag = 'smem constant byte address 0x4 - core index']
  #allocation1 [shape = 'u32[144,128]{1,0:T(1,128)}', space=vmem, size = 0x12000, scoped, tag = 'internal scratch']
  %s0 = inlined_call_operand.vmem [shape: bf16[72,128], index: 0, kind: input, shape index: {}]
  %s1 = inlined_call_operand.vmem [shape: f32[136,72], index: 1, kind: input, shape index: {}]
  %s2 = inlined_call_operand.vmem [shape: f32[4,128], index: 2, kind: input, shape index: {}]
  %s3 = inlined_call_operand.vmem [shape: f32[4,3], index: 3, kind: input, shape index: {}]
  %s4 = inlined_call_operand.vmem [shape: f32[12,128], index: 4, kind: output, shape index: {}]
  %s5 = sld [smem:[#allocation0]]
  $region26: #{grood_forward.1} parent=0
    _
  %s7 = ssub.s32 1, %s5
  %s8 = scalar_select 0, %s7, %s5
  // Predicated region
  $region2: #{grood_forward.1} parent=0 // pred_check
    _
  $region3: #{grood_forward.1} parent=0 // pred_check_branch
    %10 = sbr.rel (0) target = $region5
  $region4: #{grood_forward.1} parent=0 // pred_region
    _
  $region5: #{grood_forward.1} parent=0 // pred_fallthru
    _
  // Predicated region
  $region6: #{grood_forward.1} parent=0 // pred_check
    _
  $region7: #{grood_forward.1} parent=0 // pred_check_branch
    %12 = sbr.rel (0) target = $region9
  $region8: #{grood_forward.1} parent=0 // pred_region
    _
  $region9: #{grood_forward.1} parent=0 // pred_fallthru
    _
  // Predicated region
  $region10: #{grood_forward.1} parent=0 // pred_check
    _
  $region11: #{grood_forward.1} parent=0 // pred_check_branch
    %14 = sbr.rel (0) target = $region13
  $region12: #{grood_forward.1} parent=0 // pred_region
    _
  $region13: #{grood_forward.1} parent=0 // pred_fallthru
    _
  // Predicated region
  $region14: #{grood_forward.1} parent=0 // pred_check
    _
  $region15: #{grood_forward.1} parent=0 // pred_check_branch
    %16 = sbr.rel (0) target = $region17
  $region16: #{grood_forward.1} parent=0 // pred_region
    _
  $region17: #{grood_forward.1} parent=0 // pred_fallthru
    _
  %v17 = vld [vmem:[%s0] sm:$0xf]
  %v18 = vld [vmem:[%s0 + $0x4] sm:$0xf]
  %v19 = vld [vmem:[%s0 + $0x8] sm:$0xf]
  %v20 = vld [vmem:[%s0 + $0xc] sm:$0xf]
  %v21 = vld [vmem:[%s0 + $0x10] sm:$0xf]
  %v22 = vld [vmem:[%s0 + $0x14] sm:$0xf]
  %v23 = vld [vmem:[%s0 + $0x18] sm:$0xf]
  %v24 = vld [vmem:[%s0 + $0x1c] sm:$0xf]
  %v25 = vld [vmem:[%s0 + $0x20] sm:$0xf]
  %v26 = vunpack.c.l.bf16 %v17
  %v27 = vunpack.c.l.bf16 %v18
  %v28 = vunpack.c.l.bf16 %v19
  %v29 = vunpack.c.l.bf16 %v20
  %v30 = vunpack.c.l.bf16 %v21
  %v31 = vunpack.c.l.bf16 %v22
  %v32 = vunpack.c.l.bf16 %v23
  %v33 = vunpack.c.l.bf16 %v24
  %v34 = vunpack.c.l.bf16 %v25
  %v35 = vld [vmem:[%s1] sm:$0xff]
  %v36 = vld [vmem:[%s1 + $0x8] sm:$0xff]
  %v37 = vld [vmem:[%s1 + $0x10] sm:$0xff]
  %v38 = vld [vmem:[%s1 + $0x18] sm:$0xff]
  %v39 = vld [vmem:[%s1 + $0x20] sm:$0xff]
  %v40 = vld [vmem:[%s1 + $0x28] sm:$0xff]
  %v41 = vld [vmem:[%s1 + $0x30] sm:$0xff]
  %v42 = vld [vmem:[%s1 + $0x38] sm:$0xff]
  %v43 = vld [vmem:[%s1 + $0x40] sm:$0xff]
  %v44 = vld [vmem:[%s1 + $0x48] sm:$0xff]
  %v45 = vld [vmem:[%s1 + $0x50] sm:$0xff]
  %v46 = vld [vmem:[%s1 + $0x58] sm:$0xff]
  %v47 = vld [vmem:[%s1 + $0x60] sm:$0xff]
  %v48 = vld [vmem:[%s1 + $0x68] sm:$0xff]
  %v49 = vld [vmem:[%s1 + $0x70] sm:$0xff]
  %v50 = vld [vmem:[%s1 + $0x78] sm:$0xff]
  %v51 = vld [vmem:[%s1 + $0x80] sm:$0xff]
  %vm52 = vcmask 588800
  %v54 = vsel %vm52, %v35, 0
  %v57 = vsel %vm52, %v36, 0
  %v60 = vsel %vm52, %v37, 0
  %v63 = vsel %vm52, %v38, 0
  %v66 = vsel %vm52, %v39, 0
  %v69 = vsel %vm52, %v40, 0
  %v72 = vsel %vm52, %v41, 0
  %v75 = vsel %vm52, %v42, 0
  %v78 = vsel %vm52, %v43, 0
  %v81 = vsel %vm52, %v44, 0
  %v84 = vsel %vm52, %v45, 0
  %v87 = vsel %vm52, %v46, 0
  %v90 = vsel %vm52, %v47, 0
  %v93 = vsel %vm52, %v48, 0
  %v96 = vsel %vm52, %v49, 0
  %v99 = vsel %vm52, %v50, 0
  %v102 = vsel %vm52, %v51, 0
  %104 = vmatprep.subr.mxu0 0.0
  %105 = vmatpush1.msra.mxu0 %v26
  %106 = vmatprep.subr.mxu0 0.0
  %107 = vmatpush1.msra.mxu0 %v27
  %108 = vmatprep.subr.mxu0 0.0
  %109 = vmatpush1.msra.mxu0 %v28
  %110 = vmatprep.subr.mxu0 0.0
  %111 = vmatpush1.msra.mxu0 %v29
  %112 = vmatprep.subr.mxu0 0.0
  %113 = vmatpush1.msra.mxu0 %v30
  %114 = vmatprep.subr.mxu0 0.0
  %115 = vmatpush1.msra.mxu0 %v31
  %116 = vmatprep.subr.mxu0 0.0
  %117 = vmatpush1.msra.mxu0 %v32
  %118 = vmatprep.subr.mxu0 0.0
  %119 = vmatpush1.msra.mxu0 %v33
  %120 = vmatprep.subr.mxu0 0.0
  %121 = vmatpush1.msra.mxu0 %v34
  %122 = vmatprep.subr.mxu0 0.0
  %123 = vmatpush1.msra.mxu0 0.0
  %124 = vmatprep.subr.mxu0 0.0
  %125 = vmatpush1.msra.mxu0 0.0
  %126 = vmatprep.subr.mxu0 0.0
  %127 = vmatpush1.msra.mxu0 0.0
  %128 = vmatprep.subr.mxu0 0.0
  %129 = vmatpush1.msra.mxu0 0.0
  %130 = vmatprep.subr.mxu0 0.0
  %131 = vmatpush1.msra.mxu0 0.0
  %132 = vmatprep.subr.mxu0 0.0
  %133 = vmatpush1.msra.mxu0 0.0
  %134 = vmatprep.subr.mxu0 0.0
  %135 = vmatpush1.msra.mxu0 0.0
  %136 = vmatprep.subr.mxu0 0.0
  %137 = vmatpush1.msra.mxu0 0.0
  %138 = vmatprep.subr.mxu0 0.0
  %139 = vmatpush1.msra.mxu0 0.0
  %140 = vmatprep.subr.mxu0 0.0
  %141 = vmatpush1.msra.mxu0 0.0
  %142 = vmatprep.subr.mxu0 0.0
  %143 = vmatpush1.msra.mxu0 0.0
  %144 = vmatprep.subr.mxu0 0.0
  %145 = vmatpush1.msra.mxu0 0.0
  %146 = vmatprep.subr.mxu0 0.0
  %147 = vmatpush1.msra.mxu0 0.0
  %148 = vmatprep.subr.mxu0 0.0
  %149 = vmatpush1.msra.mxu0 0.0
  %150 = vmatprep.subr.mxu0 0.0
  %151 = vmatpush1.msra.mxu0 0.0
  %152 = vmatprep.subr.mxu0 0.0
  %153 = vmatpush1.msra.mxu0 0.0
  %154 = vmatprep.subr.mxu0 0.0
  %155 = vmatpush1.msra.mxu0 0.0
  %156 = vmatprep.subr.mxu0 0.0
  %157 = vmatpush1.msra.mxu0 0.0
  %158 = vmatprep.subr.mxu0 0.0
  %159 = vmatpush1.msra.mxu0 0.0
  %160 = vmatprep.subr.mxu0 0.0
  %161 = vmatpush1.msra.mxu0 0.0
  %162 = vmatprep.subr.mxu0 0.0
  %163 = vmatpush1.msra.mxu0 0.0
  %164 = vmatprep.subr.mxu0 0.0
  %165 = vmatpush1.msra.mxu0 0.0
  %166 = vmatprep.subr.mxu0 0.0
  %167 = vmatpush1.msra.mxu0 0.0
  %168 = vmatprep.mubr.f32.mxu0 0.0
  %169 = vmatmul.mubr.f32.gmra.mrb[0].mxu0 %v54
  %v170 = vpop.f32.mrb[0].mxu0
  %v171 = vadd.f32 0.0, %v170
  %v172 = vpop.f32.mrb[0].mxu0
  %173 = vmatprep.mubr.f32.mxu0 0.0
  %174 = vmatmul.mubr.f32.gmra.mrb[0].mxu0 %v57
  %v175 = vpop.f32.mrb[0].mxu0
  %v176 = vadd.f32 0.0, %v175
  %v177 = vpop.f32.mrb[0].mxu0
  %178 = vmatprep.mubr.f32.mxu0 0.0
  %179 = vmatmul.mubr.f32.gmra.mrb[0].mxu0 %v60
  %v180 = vpop.f32.mrb[0].mxu0
  %v181 = vadd.f32 0.0, %v180
  %v182 = vpop.f32.mrb[0].mxu0
  %183 = vmatprep.mubr.f32.mxu0 0.0
  %184 = vmatmul.mubr.f32.gmra.mrb[0].mxu0 %v63
  %v185 = vpop.f32.mrb[0].mxu0
  %v186 = vadd.f32 0.0, %v185
  %v187 = vpop.f32.mrb[0].mxu0
  %188 = vmatprep.mubr.f32.mxu0 0.0
  %189 = vmatmul.mubr.f32.gmra.mrb[0].mxu0 %v66
  %v190 = vpop.f32.mrb[0].mxu0
  %v191 = vadd.f32 0.0, %v190
  %v192 = vpop.f32.mrb[0].mxu0
  %193 = vmatprep.mubr.f32.mxu0 0.0
  %194 = vmatmul.mubr.f32.gmra.mrb[0].mxu0 %v69
  %v195 = vpop.f32.mrb[0].mxu0
  %v196 = vadd.f32 0.0, %v195
  %v197 = vpop.f32.mrb[0].mxu0
  %198 = vmatprep.mubr.f32.mxu0 0.0
  %199 = vmatmul.mubr.f32.gmra.mrb[0].mxu0 %v72
  %v200 = vpop.f32.mrb[0].mxu0
  %v201 = vadd.f32 0.0, %v200
  %v202 = vpop.f32.mrb[0].mxu0
  %203 = vmatprep.mubr.f32.mxu0 0.0
  %204 = vmatmul.mubr.f32.gmra.mrb[0].mxu0 %v75
  %v205 = vpop.f32.mrb[0].mxu0
  %v206 = vadd.f32 0.0, %v205
  %v207 = vpop.f32.mrb[0].mxu0
  %208 = vmatprep.mubr.f32.mxu0 0.0
  %209 = vmatmul.mubr.f32.gmra.mrb[0].mxu0 %v78
  %v210 = vpop.f32.mrb[0].mxu0
  %v211 = vadd.f32 0.0, %v210
  %v212 = vpop.f32.mrb[0].mxu0
  %213 = vmatprep.mubr.f32.mxu0 0.0
  %214 = vmatmul.mubr.f32.gmra.mrb[0].mxu0 %v81
  %v215 = vpop.f32.mrb[0].mxu0
  %v216 = vadd.f32 0.0, %v215
  %v217 = vpop.f32.mrb[0].mxu0
  %218 = vmatprep.mubr.f32.mxu0 0.0
  %219 = vmatmul.mubr.f32.gmra.mrb[0].mxu0 %v84
  %v220 = vpop.f32.mrb[0].mxu0
  %v221 = vadd.f32 0.0, %v220
  %v222 = vpop.f32.mrb[0].mxu0
  %223 = vmatprep.mubr.f32.mxu0 0.0
  %224 = vmatmul.mubr.f32.gmra.mrb[0].mxu0 %v87
  %v225 = vpop.f32.mrb[0].mxu0
  %v226 = vadd.f32 0.0, %v225
  %v227 = vpop.f32.mrb[0].mxu0
  %228 = vmatprep.mubr.f32.mxu0 0.0
  %229 = vmatmul.mubr.f32.gmra.mrb[0].mxu0 %v90
  %v230 = vpop.f32.mrb[0].mxu0
  %v231 = vadd.f32 0.0, %v230
  %v232 = vpop.f32.mrb[0].mxu0
  %233 = vmatprep.mubr.f32.mxu0 0.0
  %234 = vmatmul.mubr.f32.gmra.mrb[0].mxu0 %v93
  %v235 = vpop.f32.mrb[0].mxu0
  %v236 = vadd.f32 0.0, %v235
  %v237 = vpop.f32.mrb[0].mxu0
  %238 = vmatprep.mubr.f32.mxu0 0.0
  %239 = vmatmul.mubr.f32.gmra.mrb[0].mxu0 %v96
  %v240 = vpop.f32.mrb[0].mxu0
  %v241 = vadd.f32 0.0, %v240
  %v242 = vpop.f32.mrb[0].mxu0
  %243 = vmatprep.mubr.f32.mxu0 0.0
  %244 = vmatmul.mubr.f32.gmra.mrb[0].mxu0 %v99
  %v245 = vpop.f32.mrb[0].mxu0
  %v246 = vadd.f32 0.0, %v245
  %v247 = vpop.f32.mrb[0].mxu0
  %248 = vmatprep.mubr.f32.mxu0 0.0
  %249 = vmatmul.mubr.f32.gmra.mrb[0].mxu0 %v102
  %v250 = vpop.f32.mrb[0].mxu0
  %v251 = vadd.f32 0.0, %v250
  %v252 = vpop.f32.mrb[0].mxu0
  %253 = vdwg.mxu0
  %v254 = vld [vmem:[%s2] sm:$0xf]
  %v255 = vmul.f32 %v171, %v171
  %v256 = vmul.f32 %v176, %v176
  %v257 = vmul.f32 %v181, %v181
  %v258 = vmul.f32 %v186, %v186
  %v259 = vmul.f32 %v191, %v191
  %v260 = vmul.f32 %v196, %v196
  %v261 = vmul.f32 %v201, %v201
  %v262 = vmul.f32 %v206, %v206
  %v263 = vmul.f32 %v211, %v211
  %v264 = vmul.f32 %v216, %v216
  %v265 = vmul.f32 %v221, %v221
  %v266 = vmul.f32 %v226, %v226
  %v267 = vmul.f32 %v231, %v231
  %v268 = vmul.f32 %v236, %v236
  %v269 = vmul.f32 %v241, %v241
  %v270 = vmul.f32 %v246, %v246
  %271 = vmatprep.subr.mxu0 0.0
  %272 = vmatpush1.msra.mxu0 %v255
  %273 = vmatprep.subr.mxu0 0.0
  %274 = vmatpush1.msra.mxu0 %v256
  %275 = vmatprep.subr.mxu0 0.0
  %276 = vmatpush1.msra.mxu0 %v257
  %277 = vmatprep.subr.mxu0 0.0
  %278 = vmatpush1.msra.mxu0 %v258
  %279 = vmatprep.subr.mxu0 0.0
  %280 = vmatpush1.msra.mxu0 %v259
  %281 = vmatprep.subr.mxu0 0.0
  %282 = vmatpush1.msra.mxu0 %v260
  %283 = vmatprep.subr.mxu0 0.0
  %284 = vmatpush1.msra.mxu0 %v261
  %285 = vmatprep.subr.mxu0 0.0
  %286 = vmatpush1.msra.mxu0 %v262
  %287 = vmatprep.subr.mxu0 0.0
  %288 = vmatpush1.msra.mxu0 %v263
  %289 = vmatprep.subr.mxu0 0.0
  %290 = vmatpush1.msra.mxu0 %v264
  %291 = vmatprep.subr.mxu0 0.0
  %292 = vmatpush1.msra.mxu0 %v265
  %293 = vmatprep.subr.mxu0 0.0
  %294 = vmatpush1.msra.mxu0 %v266
  %295 = vmatprep.subr.mxu0 0.0
  %296 = vmatpush1.msra.mxu0 %v267
  %297 = vmatprep.subr.mxu0 0.0
  %298 = vmatpush1.msra.mxu0 %v268
  %299 = vmatprep.subr.mxu0 0.0
  %300 = vmatpush1.msra.mxu0 %v269
  %301 = vmatprep.subr.mxu0 0.0
  %302 = vmatpush1.msra.mxu0 %v270
  %303 = vmatprep.subr.mxu0 0.0
  %304 = vmatpush1.msra.mxu0 0.0
  %305 = vmatprep.subr.mxu0 0.0
  %306 = vmatpush1.msra.mxu0 0.0
  %307 = vmatprep.subr.mxu0 0.0
  %308 = vmatpush1.msra.mxu0 0.0
  %309 = vmatprep.subr.mxu0 0.0
  %310 = vmatpush1.msra.mxu0 0.0
  %311 = vmatprep.subr.mxu0 0.0
  %312 = vmatpush1.msra.mxu0 0.0
  %313 = vmatprep.subr.mxu0 0.0
  %314 = vmatpush1.msra.mxu0 0.0
  %315 = vmatprep.subr.mxu0 0.0
  %316 = vmatpush1.msra.mxu0 0.0
  %317 = vmatprep.subr.mxu0 0.0
  %318 = vmatpush1.msra.mxu0 0.0
  %319 = vmatprep.subr.mxu0 0.0
  %320 = vmatpush1.msra.mxu0 0.0
  %321 = vmatprep.subr.mxu0 0.0
  %322 = vmatpush1.msra.mxu0 0.0
  %323 = vmatprep.subr.mxu0 0.0
  %324 = vmatpush1.msra.mxu0 0.0
  %325 = vmatprep.subr.mxu0 0.0
  %326 = vmatpush1.msra.mxu0 0.0
  %327 = vmatprep.subr.mxu0 0.0
  %328 = vmatpush1.msra.mxu0 0.0
  %329 = vmatprep.subr.mxu0 0.0
  %330 = vmatpush1.msra.mxu0 0.0
  %331 = vmatprep.subr.mxu0 0.0
  %332 = vmatpush1.msra.mxu0 0.0
  %333 = vmatprep.subr.mxu0 0.0
  %334 = vmatpush1.msra.mxu0 0.0
  %335 = vmatprep.mubr.f32.mxu0 0.0
  %336 = vmatmul.mubr.f32.gmra.mrb[0].mxu0 %v254
  %v337 = vpop.f32.mrb[0].mxu0
  %v338 = vadd.f32 0.0, %v337
  %v339 = vpop.f32.mrb[0].mxu0
  %340 = vdwg.mxu0
  %v341 = vmax.f32 %v338, 0.0
  %v342 = vrsqrt.pop %v341
  %v343 = vmul.f32 %v341, %v342
  %vm344 = vcmp.eq.f32.partialorder %v341, inf
  %v345 = vsel %vm344, %v341, %v343
  %vm346 = vcmp.eq.f32.partialorder %v341, 0.0
  %v347 = vand.u32 %v341, 2147483648
  %v348 = vsel %vm346, %v347, %v345
  %v349 = vmul.f32 %v348, 0.5
  %v350 = vadd.f32 %v349, 1.0
  %v351 = vrcp.pop %v350
  %v352 = vmul.f32 1.0, %v351
  %v353 = vld [vmem:[%s3] sm:$0xf]
  %355 = vset.pattern.permute.xlu0 0
  %356 = vperm.xlu0 %355, %v353
  %v357 = vpop.permute.xlu0 %356
  %v359 = vmul.f32 %v357, %v251
  %360 = vset.pattern.permute.xlu0 1
  %361 = vperm.xlu0 %360, %v353
  %v362 = vpop.permute.xlu0 %361
  %v364 = vmul.f32 %v362, %v352
  %v365 = vadd.f32 %v359, %v364
  %366 = vset.pattern.permute.xlu0 2
  %367 = vperm.xlu0 %366, %v353
  %v368 = vpop.permute.xlu0 %367
  %v370 = vadd.f32 %v365, %v368
  %v371 = vxor.u32 %v370, 2147483648
  %v372 = vmul.f32 %v371, 1.442695
  %v373 = vpow.pop %v372
  %v374 = vadd.f32 %v373, 1.0
  %v375 = vrcp.pop %v374
  %v376 = vmul.f32 1.0, %v375
  %v378 = vrot.slane %v348, 4
  %vm380 = vcmask 1043456
  %v381 = vsel %vm380, %v251, %v378
  %382 = vst [vmem:[%s4] sm:$0xff] %v381
  %383 = vst [vmem:[%s4 + $0x8] sm:$0xf] %v376
  // Predicated region
  $region18: #{grood_forward.1} parent=0 // pred_check
    _
  $region19: #{grood_forward.1} parent=0 // pred_check_branch
    %385 = sbr.rel (0) target = $region21
  $region20: #{grood_forward.1} parent=0 // pred_region
    _
  $region21: #{grood_forward.1} parent=0 // pred_fallthru
    _
  // Predicated region
  $region22: #{grood_forward.1} parent=0 // pred_check
    _
  $region23: #{grood_forward.1} parent=0 // pred_check_branch
    %387 = sbr.rel (0) target = $region25
  $region24: #{grood_forward.1} parent=0 // pred_region
    _
  $region25: #{grood_forward.1} parent=0 // pred_fallthru
    _

</llo_original>
